<compile_context>
chip_gen: v6e
topology: v6e:2x2x1
jax: 0.10.0
libtpu: 0.0.40
codegen_flags: <defaults>
</compile_context>

<pallas_src>
import functools

import numpy as np
import jax
import jax.numpy as jnp
from jax import lax
from jax.experimental import pallas as pl
from jax.experimental.pallas import tpu as pltpu

_EPS = 1e-5                      # nn.GroupNorm default eps
_INV_SQRT2 = 0.7071067811865476  # 1/sqrt(2) for exact (erf) GELU


def _gelu_exact(y):
    return 0.5 * y * (1.0 + lax.erf(y * jnp.float32(_INV_SQRT2)))


def _round_up(v, m):
    return (v + m - 1) // m * m


# ----------------------------------------------------------------------------
# Fused kernel: one batch sample per grid step, everything resident in VMEM.
# ----------------------------------------------------------------------------
def _fused_double_conv_kernel(x_ref, m_ref, w1_ref, g1_ref, b1_ref,
                              w2_ref, g2_ref, b2_ref, o_ref,
                              buf1, col1, buf2, col2, *, H, W, residual):
    HW = H * W
    PAD = W + 1  # max |flat offset| of a 3x3 tap in the (C, H*W) layout

    def conv3x3(inp, ci, w_ref, buf, col):
        # inp: (ci, HW) f32 | w_ref: (co, 9*ci_p) bf16
        # buf: (ci_p, HW + 2*PAD) f32 staging | col: (9*ci_p, HW) f32 im2col
        ci_p = buf.shape[0]
        zhalo = jnp.zeros((ci_p, PAD), jnp.float32)
        buf[:, :PAD] = zhalo                  # vertical OOB taps read these zeros
        buf[:, PAD + HW:] = zhalo
        if ci_p > ci:                         # zero pad-channel rows (static guard)
            buf[ci:, PAD:PAD + HW] = jnp.zeros((ci_p - ci, HW), jnp.float32)
        buf[:ci, PAD:PAD + HW] = inp          # stage input once

        t = 0
        for dy in range(3):
            for dx in range(3):
                off = (dy - 1) * W + (dx - 1)
                # static lane-shifted window of the staged input
                win = buf[:, PAD + off:PAD + off + HW]
                # only horizontal wrap needs masking; vertical OOB hits the zero halo
                if dx == 0:
                    win = win * m_ref[0]      # left-neighbour taps: mask column x==0
                elif dx == 2:
                    win = win * m_ref[1]      # right-neighbour taps: mask column x==W-1
                # sublane-aligned store into the im2col scratch (ci_p % 8 == 0)
                col[t * ci_p:(t + 1) * ci_p, :] = win
                t += 1

        # single MXU contraction per conv: (co, 9*ci_p) x (9*ci_p, HW), bf16 in,
        # f32 accumulate.
        return jnp.dot(w_ref[...], col[...].astype(jnp.bfloat16),
                       preferred_element_type=jnp.float32)

    def groupnorm1(h, g_ref, b_ref):
        # GroupNorm(num_groups=1) with single-pass statistics over all of (C, HW).
        n = jnp.float32(h.shape[0] * h.shape[1])
        s = jnp.sum(h)
        ss = jnp.sum(h * h)
        mean = s / n
        var = jnp.maximum(ss / n - mean * mean, 0.0)   # clamp cancellation negatives
        inv = lax.rsqrt(var + jnp.float32(_EPS))
        return (h - mean) * inv * g_ref[...] + b_ref[...]

    x = x_ref[0].astype(jnp.float32)                   # (Cin, HW)
    cin = x.shape[0]
    h = conv3x3(x, cin, w1_ref, buf1, col1)
    h = _gelu_exact(groupnorm1(h, g1_ref, b1_ref))
    h = conv3x3(h, h.shape[0], w2_ref, buf2, col2)
    y = groupnorm1(h, g2_ref, b2_ref)
    if residual:
        y = _gelu_exact(x + y)                         # F.gelu(x + double_conv(x))
    o_ref[0] = y.astype(o_ref.dtype)


# ----------------------------------------------------------------------------
# Host-side helpers + wrapper (NCHW in / NCHW out, PyTorch parameter layouts).
# ----------------------------------------------------------------------------
def _horizontal_masks(H, W):
    """(2, 1, H*W) f32 {0,1}: validity of left/right neighbour columns."""
    col = np.arange(H * W) % W
    left_ok = (col > 0).astype(np.float32).reshape(1, H * W)       # dx == 0 taps
    right_ok = (col < W - 1).astype(np.float32).reshape(1, H * W)  # dx == 2 taps
    return np.stack([left_ok, right_ok])


def _repack_weights(w, ci_p):
    """OIHW (Co, Ci, 3, 3) -> (Co, 9*ci_p) bf16; pad channels get zero columns."""
    co, ci = w.shape[0], w.shape[1]
    wt = jnp.transpose(w.astype(jnp.float32), (2, 3, 0, 1)).reshape(9, co, ci)
    wt = jnp.pad(wt, ((0, 0), (0, 0), (0, ci_p - ci)))
    wt = jnp.transpose(wt, (1, 0, 2)).reshape(co, 9 * ci_p)
    return wt.astype(jnp.bfloat16)


def double_conv_forward(x_nchw, params, *, residual=False):
    """x: (N, Cin, H, W) f32; params = (w1, g1, b1, w2, g2, b2), conv weights OIHW."""
    w1, g1, b1, w2, g2, b2 = params
    N, Cin, H, W = x_nchw.shape
    Cmid, Cout = w1.shape[0], w2.shape[0]
    if residual and Cin != Cout:
        raise ValueError("residual path requires channels_in == channels_out")
    HW = H * W
    PAD = W + 1
    PW = HW + 2 * PAD
    Cin_p = _round_up(Cin, 8)     # sublane-align im2col row blocks
    Cmid_p = _round_up(Cmid, 8)

    # Free contiguous collapse NCHW -> (N, C, H*W); no transpose, no spatial pad.
    x_flat = x_nchw.reshape(N, Cin, HW).astype(jnp.float32)
    masks = jnp.asarray(_horizontal_masks(H, W))                  # (2, 1, HW)
    w1_t = _repack_weights(w1, Cin_p)                             # (Cmid, 9*Cin_p) bf16
    w2_t = _repack_weights(w2, Cmid_p)                            # (Cout, 9*Cmid_p) bf16
    g1c = g1.reshape(Cmid, 1).astype(jnp.float32)
    b1c = b1.reshape(Cmid, 1).astype(jnp.float32)
    g2c = g2.reshape(Cout, 1).astype(jnp.float32)
    b2c = b2.reshape(Cout, 1).astype(jnp.float32)

    kernel = functools.partial(_fused_double_conv_kernel, H=H, W=W,
                               residual=residual)
    out_flat = pl.pallas_call(
        kernel,
        out_shape=jax.ShapeDtypeStruct((N, Cout, HW), jnp.float32),
        grid_spec=pltpu.PrefetchScalarGridSpec(
            num_scalar_prefetch=0,
            grid=(N,),
            in_specs=[
                pl.BlockSpec((1, Cin, HW), lambda n: (n, 0, 0)),        # x (per sample)
                pl.BlockSpec((2, 1, HW), lambda n: (0, 0, 0)),          # horiz masks
                pl.BlockSpec((Cmid, 9 * Cin_p), lambda n: (0, 0)),      # conv1 weights
                pl.BlockSpec((Cmid, 1), lambda n: (0, 0)),              # gn1 gamma
                pl.BlockSpec((Cmid, 1), lambda n: (0, 0)),              # gn1 beta
                pl.BlockSpec((Cout, 9 * Cmid_p), lambda n: (0, 0)),     # conv2 weights
                pl.BlockSpec((Cout, 1), lambda n: (0, 0)),              # gn2 gamma
                pl.BlockSpec((Cout, 1), lambda n: (0, 0)),              # gn2 beta
            ],
            out_specs=pl.BlockSpec((1, Cout, HW), lambda n: (n, 0, 0)),
            scratch_shapes=[
                pltpu.VMEM((Cin_p, PW), jnp.float32),        # conv1 padded staging
                pltpu.VMEM((9 * Cin_p, HW), jnp.float32),    # conv1 im2col
                pltpu.VMEM((Cmid_p, PW), jnp.float32),       # conv2 padded staging
                pltpu.VMEM((9 * Cmid_p, HW), jnp.float32),   # conv2 im2col
            ],
        ),
        compiler_params=pltpu.CompilerParams(
            dimension_semantics=("parallel",)),   # N=2 steps -> both TCs on v7x
    )(x_flat, masks, w1_t, g1c, b1c, w2_t, g2c, b2c)

    return out_flat.reshape(N, Cout, H, W)


# ----------------------------------------------------------------------------
# Pure-JAX reference for verification (matches the PyTorch module, f32).
# ----------------------------------------------------------------------------
def _ref_forward(x, params, *, residual=False):
    w1, g1, b1, w2, g2, b2 = params

    def conv(a, w):
        return lax.conv_general_dilated(
            a, w, (1, 1), "SAME",
            dimension_numbers=("NCHW", "OIHW", "NCHW"))

    def gn(a, g, b):
        mean = jnp.mean(a, axis=(1, 2, 3), keepdims=True)
        var = jnp.mean(jnp.square(a - mean), axis=(1, 2, 3), keepdims=True)
        xhat = (a - mean) / jnp.sqrt(var + _EPS)
        return xhat * g.reshape(1, -1, 1, 1) + b.reshape(1, -1, 1, 1)

    h = jax.nn.gelu(gn(conv(x, w1), g1, b1), approximate=False)
    y = gn(conv(h, w2), g2, b2)
    if residual:
        y = jax.nn.gelu(x + y, approximate=False)
    return y


def _make_params(key, cin, cmid, cout):
    k1, k2, k3, k4, k5, k6 = jax.random.split(key, 6)
    w1 = jax.random.normal(k1, (cmid, cin, 3, 3), jnp.float32) * 0.2
    w2 = jax.random.normal(k2, (cout, cmid, 3, 3), jnp.float32) * 0.2
    g1 = 1.0 + 0.1 * jax.random.normal(k3, (cmid,), jnp.float32)
    b1 = 0.1 * jax.random.normal(k4, (cmid,), jnp.float32)
    g2 = 1.0 + 0.1 * jax.random.normal(k5, (cout,), jnp.float32)
    b2 = 0.1 * jax.random.normal(k6, (cout,), jnp.float32)
    return (w1, g1, b1, w2, g2, b2)


if __name__ == "__main__":
    key = jax.random.PRNGKey(0)
    kx, kp, kxr, kpr = jax.random.split(key, 4)

    # bf16 MXU operands vs f32 reference -> looser tolerance than pure-f32 (1e-4).
    TOL = 5e-2

    # DoubleConv(channels_in=4, channels_out=8), non-residual.
    N, Cin, H, W = 2, 4, 16, 16
    Cmid = Cout = 8
    x = jax.random.normal(kx, (N, Cin, H, W), jnp.float32)
    params = _make_params(kp, Cin, Cmid, Cout)
    out = jax.block_until_ready(double_conv_forward(x, params, residual=False))
    ref = _ref_forward(x, params, residual=False)
    assert out.shape == (N, Cout, H, W)
    assert jnp.allclose(out, ref, rtol=TOL, atol=TOL), "non-residual mismatch"

    # DoubleConv(channels_in=8, channels_out=8, residual=True).
    xr = jax.random.normal(kxr, (N, 8, H, W), jnp.float32)
    params_r = _make_params(kpr, 8, 8, 8)
    out_r = jax.block_until_ready(double_conv_forward(xr, params_r, residual=True))
    ref_r = _ref_forward(xr, params_r, residual=True)
    assert jnp.allclose(out_r, ref_r, rtol=TOL, atol=TOL), "residual mismatch"

    print("KERNEL_OK")
</pallas_src>

<mosaic_0001>
module attributes {stable_mosaic.version = 11 : i64} {
  func.func @_fused_double_conv_kernel(%arg0: i32, %arg1: memref<1x4x256xf32, #tpu.memory_space<vmem>>, %arg2: memref<2x1x256xf32, #tpu.memory_space<vmem>>, %arg3: memref<8x72xbf16, #tpu.memory_space<vmem>>, %arg4: memref<8x1xf32, #tpu.memory_space<vmem>>, %arg5: memref<8x1xf32, #tpu.memory_space<vmem>>, %arg6: memref<8x72xbf16, #tpu.memory_space<vmem>>, %arg7: memref<8x1xf32, #tpu.memory_space<vmem>>, %arg8: memref<8x1xf32, #tpu.memory_space<vmem>>, %arg9: memref<1x8x256xf32, #tpu.memory_space<vmem>>, %arg10: memref<8x290xf32, #tpu.memory_space<vmem>>, %arg11: memref<72x256xf32, #tpu.memory_space<vmem>>, %arg12: memref<8x290xf32, #tpu.memory_space<vmem>>, %arg13: memref<72x256xf32, #tpu.memory_space<vmem>>) attributes {dimension_semantics = [#tpu.dimension_semantics<parallel>], iteration_bounds = array<i64: 2>, scalar_prefetch = 0 : i64, scratch_operands = 4 : i64, tpu.core_type = #tpu.core_type<tc>, window_params = [{transform_indices = @transform_0, window_bounds = array<i64: 1, 4, 256>}, {pipeline_mode = #tpu.pipeline_mode<synchronous>, transform_indices = @transform_1, window_bounds = array<i64: 2, 1, 256>}, {pipeline_mode = #tpu.pipeline_mode<synchronous>, transform_indices = @transform_2, window_bounds = array<i64: 8, 72>}, {pipeline_mode = #tpu.pipeline_mode<synchronous>, transform_indices = @transform_3, window_bounds = array<i64: 8, 1>}, {pipeline_mode = #tpu.pipeline_mode<synchronous>, transform_indices = @transform_4, window_bounds = array<i64: 8, 1>}, {pipeline_mode = #tpu.pipeline_mode<synchronous>, transform_indices = @transform_5, window_bounds = array<i64: 8, 72>}, {pipeline_mode = #tpu.pipeline_mode<synchronous>, transform_indices = @transform_6, window_bounds = array<i64: 8, 1>}, {pipeline_mode = #tpu.pipeline_mode<synchronous>, transform_indices = @transform_7, window_bounds = array<i64: 8, 1>}, {transform_indices = @transform_8, window_bounds = array<i64: 1, 8, 256>}]} {
    %c0 = arith.constant 0 : index
    %c0_0 = arith.constant 0 : index
    %c0_1 = arith.constant 0 : index
    %0 = vector.load %arg1[%c0, %c0_0, %c0_1] : memref<1x4x256xf32, #tpu.memory_space<vmem>>, vector<1x4x256xf32>
    %1 = vector.shape_cast %0 : vector<1x4x256xf32> to vector<4x256xf32>
    %cst = arith.constant 0.000000e+00 : f32
    %2 = vector.broadcast %cst : f32 to vector<8x17xf32>
    %c0_2 = arith.constant 0 : index
    %c0_3 = arith.constant 0 : index
    %3 = vector.load %arg10[%c0_2, %c0_3] : memref<8x290xf32, #tpu.memory_space<vmem>>, vector<8x17xf32>
    tpu.vector_store %arg10[%c0_2, %c0_3], %2 {strides = array<i32>} : memref<8x290xf32, #tpu.memory_space<vmem>>, vector<8x17xf32>,
    %c0_4 = arith.constant 0 : index
    %c273 = arith.constant 273 : index
    %4 = vector.load %arg10[%c0_4, %c273] : memref<8x290xf32, #tpu.memory_space<vmem>>, vector<8x17xf32>
    tpu.vector_store %arg10[%c0_4, %c273], %2 {strides = array<i32>} : memref<8x290xf32, #tpu.memory_space<vmem>>, vector<8x17xf32>,
    %cst_5 = arith.constant 0.000000e+00 : f32
    %5 = vector.broadcast %cst_5 : f32 to vector<4x256xf32>
    %c4 = arith.constant 4 : index
    %c17 = arith.constant 17 : index
    %6 = vector.load %arg10[%c4, %c17] : memref<8x290xf32, #tpu.memory_space<vmem>>, vector<4x256xf32>
    tpu.vector_store %arg10[%c4, %c17], %5 {strides = array<i32>} : memref<8x290xf32, #tpu.memory_space<vmem>>, vector<4x256xf32>,
    %c0_6 = arith.constant 0 : index
    %c17_7 = arith.constant 17 : index
    %7 = vector.load %arg10[%c0_6, %c17_7] : memref<8x290xf32, #tpu.memory_space<vmem>>, vector<4x256xf32>
    tpu.vector_store %arg10[%c0_6, %c17_7], %1 {strides = array<i32>} : memref<8x290xf32, #tpu.memory_space<vmem>>, vector<4x256xf32>,
    %c0_8 = arith.constant 0 : index
    %c0_9 = arith.constant 0 : index
    %8 = vector.load %arg10[%c0_8, %c0_9] : memref<8x290xf32, #tpu.memory_space<vmem>>, vector<8x256xf32>
    %c0_10 = arith.constant 0 : index
    %c0_11 = arith.constant 0 : index
    %c0_12 = arith.constant 0 : index
    %9 = vector.load %arg2[%c0_10, %c0_11, %c0_12] : memref<2x1x256xf32, #tpu.memory_space<vmem>>, vector<1x1x256xf32>
    %10 = vector.shape_cast %9 : vector<1x1x256xf32> to vector<1x256xf32>
    %11 = vector.broadcast %10 : vector<1x256xf32> to vector<8x256xf32>
    %12 = arith.mulf %8, %11 : vector<8x256xf32>
    %c0_13 = arith.constant 0 : index
    %c0_14 = arith.constant 0 : index
    %13 = vector.load %arg11[%c0_13, %c0_14] : memref<72x256xf32, #tpu.memory_space<vmem>>, vector<8x256xf32>
    tpu.vector_store %arg11[%c0_13, %c0_14], %12 {strides = array<i32>} : memref<72x256xf32, #tpu.memory_space<vmem>>, vector<8x256xf32>,
    %c0_15 = arith.constant 0 : index
    %c1 = arith.constant 1 : index
    %14 = vector.load %arg10[%c0_15, %c1] : memref<8x290xf32, #tpu.memory_space<vmem>>, vector<8x256xf32>
    %c8 = arith.constant 8 : index
    %c0_16 = arith.constant 0 : index
    %15 = vector.load %arg11[%c8, %c0_16] : memref<72x256xf32, #tpu.memory_space<vmem>>, vector<8x256xf32>
    tpu.vector_store %arg11[%c8, %c0_16], %14 {strides = array<i32>} : memref<72x256xf32, #tpu.memory_space<vmem>>, vector<8x256xf32>,
    %c0_17 = arith.constant 0 : index
    %c2 = arith.constant 2 : index
    %16 = vector.load %arg10[%c0_17, %c2] : memref<8x290xf32, #tpu.memory_space<vmem>>, vector<8x256xf32>
    %c1_18 = arith.constant 1 : index
    %c0_19 = arith.constant 0 : index
    %c0_20 = arith.constant 0 : index
    %17 = vector.load %arg2[%c1_18, %c0_19, %c0_20] : memref<2x1x256xf32, #tpu.memory_space<vmem>>, vector<1x1x256xf32>
    %18 = vector.shape_cast %17 : vector<1x1x256xf32> to vector<1x256xf32>
    %19 = vector.broadcast %18 : vector<1x256xf32> to vector<8x256xf32>
    %20 = arith.mulf %16, %19 : vector<8x256xf32>
    %c16 = arith.constant 16 : index
    %c0_21 = arith.constant 0 : index
    %21 = vector.load %arg11[%c16, %c0_21] : memref<72x256xf32, #tpu.memory_space<vmem>>, vector<8x256xf32>
    tpu.vector_store %arg11[%c16, %c0_21], %20 {strides = array<i32>} : memref<72x256xf32, #tpu.memory_space<vmem>>, vector<8x256xf32>,
    %c0_22 = arith.constant 0 : index
    %c16_23 = arith.constant 16 : index
    %22 = vector.load %arg10[%c0_22, %c16_23] : memref<8x290xf32, #tpu.memory_space<vmem>>, vector<8x256xf32>
    %c0_24 = arith.constant 0 : index
    %c0_25 = arith.constant 0 : index
    %c0_26 = arith.constant 0 : index
    %23 = vector.load %arg2[%c0_24, %c0_25, %c0_26] : memref<2x1x256xf32, #tpu.memory_space<vmem>>, vector<1x1x256xf32>
    %24 = vector.shape_cast %23 : vector<1x1x256xf32> to vector<1x256xf32>
    %25 = vector.broadcast %24 : vector<1x256xf32> to vector<8x256xf32>
    %26 = arith.mulf %22, %25 : vector<8x256xf32>
    %c24 = arith.constant 24 : index
    %c0_27 = arith.constant 0 : index
    %27 = vector.load %arg11[%c24, %c0_27] : memref<72x256xf32, #tpu.memory_space<vmem>>, vector<8x256xf32>
    tpu.vector_store %arg11[%c24, %c0_27], %26 {strides = array<i32>} : memref<72x256xf32, #tpu.memory_space<vmem>>, vector<8x256xf32>,
    %c0_28 = arith.constant 0 : index
    %c17_29 = arith.constant 17 : index
    %28 = vector.load %arg10[%c0_28, %c17_29] : memref<8x290xf32, #tpu.memory_space<vmem>>, vector<8x256xf32>
    %c32 = arith.constant 32 : index
    %c0_30 = arith.constant 0 : index
    %29 = vector.load %arg11[%c32, %c0_30] : memref<72x256xf32, #tpu.memory_space<vmem>>, vector<8x256xf32>
    tpu.vector_store %arg11[%c32, %c0_30], %28 {strides = array<i32>} : memref<72x256xf32, #tpu.memory_space<vmem>>, vector<8x256xf32>,
    %c0_31 = arith.constant 0 : index
    %c18 = arith.constant 18 : index
    %30 = vector.load %arg10[%c0_31, %c18] : memref<8x290xf32, #tpu.memory_space<vmem>>, vector<8x256xf32>
    %c1_32 = arith.constant 1 : index
    %c0_33 = arith.constant 0 : index
    %c0_34 = arith.constant 0 : index
    %31 = vector.load %arg2[%c1_32, %c0_33, %c0_34] : memref<2x1x256xf32, #tpu.memory_space<vmem>>, vector<1x1x256xf32>
    %32 = vector.shape_cast %31 : vector<1x1x256xf32> to vector<1x256xf32>
    %33 = vector.broadcast %32 : vector<1x256xf32> to vector<8x256xf32>
    %34 = arith.mulf %30, %33 : vector<8x256xf32>
    %c40 = arith.constant 40 : index
    %c0_35 = arith.constant 0 : index
    %35 = vector.load %arg11[%c40, %c0_35] : memref<72x256xf32, #tpu.memory_space<vmem>>, vector<8x256xf32>
    tpu.vector_store %arg11[%c40, %c0_35], %34 {strides = array<i32>} : memref<72x256xf32, #tpu.memory_space<vmem>>, vector<8x256xf32>,
    %c0_36 = arith.constant 0 : index
    %c32_37 = arith.constant 32 : index
    %36 = vector.load %arg10[%c0_36, %c32_37] : memref<8x290xf32, #tpu.memory_space<vmem>>, vector<8x256xf32>
    %c0_38 = arith.constant 0 : index
    %c0_39 = arith.constant 0 : index
    %c0_40 = arith.constant 0 : index
    %37 = vector.load %arg2[%c0_38, %c0_39, %c0_40] : memref<2x1x256xf32, #tpu.memory_space<vmem>>, vector<1x1x256xf32>
    %38 = vector.shape_cast %37 : vector<1x1x256xf32> to vector<1x256xf32>
    %39 = vector.broadcast %38 : vector<1x256xf32> to vector<8x256xf32>
    %40 = arith.mulf %36, %39 : vector<8x256xf32>
    %c48 = arith.constant 48 : index
    %c0_41 = arith.constant 0 : index
    %41 = vector.load %arg11[%c48, %c0_41] : memref<72x256xf32, #tpu.memory_space<vmem>>, vector<8x256xf32>
    tpu.vector_store %arg11[%c48, %c0_41], %40 {strides = array<i32>} : memref<72x256xf32, #tpu.memory_space<vmem>>, vector<8x256xf32>,
    %c0_42 = arith.constant 0 : index
    %c33 = arith.constant 33 : index
    %42 = vector.load %arg10[%c0_42, %c33] : memref<8x290xf32, #tpu.memory_space<vmem>>, vector<8x256xf32>
    %c56 = arith.constant 56 : index
    %c0_43 = arith.constant 0 : index
    %43 = vector.load %arg11[%c56, %c0_43] : memref<72x256xf32, #tpu.memory_space<vmem>>, vector<8x256xf32>
    tpu.vector_store %arg11[%c56, %c0_43], %42 {strides = array<i32>} : memref<72x256xf32, #tpu.memory_space<vmem>>, vector<8x256xf32>,
    %c0_44 = arith.constant 0 : index
    %c34 = arith.constant 34 : index
    %44 = vector.load %arg10[%c0_44, %c34] : memref<8x290xf32, #tpu.memory_space<vmem>>, vector<8x256xf32>
    %c1_45 = arith.constant 1 : index
    %c0_46 = arith.constant 0 : index
    %c0_47 = arith.constant 0 : index
    %45 = vector.load %arg2[%c1_45, %c0_46, %c0_47] : memref<2x1x256xf32, #tpu.memory_space<vmem>>, vector<1x1x256xf32>
    %46 = vector.shape_cast %45 : vector<1x1x256xf32> to vector<1x256xf32>
    %47 = vector.broadcast %46 : vector<1x256xf32> to vector<8x256xf32>
    %48 = arith.mulf %44, %47 : vector<8x256xf32>
    %c64 = arith.constant 64 : index
    %c0_48 = arith.constant 0 : index
    %49 = vector.load %arg11[%c64, %c0_48] : memref<72x256xf32, #tpu.memory_space<vmem>>, vector<8x256xf32>
    tpu.vector_store %arg11[%c64, %c0_48], %48 {strides = array<i32>} : memref<72x256xf32, #tpu.memory_space<vmem>>, vector<8x256xf32>,
    %c0_49 = arith.constant 0 : index
    %c0_50 = arith.constant 0 : index
    %50 = vector.load %arg3[%c0_49, %c0_50] : memref<8x72xbf16, #tpu.memory_space<vmem>>, vector<8x72xbf16>
    %c0_51 = arith.constant 0 : index
    %c0_52 = arith.constant 0 : index
    %51 = vector.load %arg11[%c0_51, %c0_52] : memref<72x256xf32, #tpu.memory_space<vmem>>, vector<72x256xf32>
    %52 = arith.truncf %51 : vector<72x256xf32> to vector<72x256xbf16>
    %cst_53 = arith.constant dense<0.000000e+00> : vector<8x256xf32>
    %53 = tpu.matmul %50, %52, %cst_53 {dimension_numbers = #tpu.dot_dimension_numbers<[1], [0], [0], [1], [0, 0, 1, 1], [], []>} : vector<8x72xbf16>, vector<72x256xbf16>, vector<8x256xf32> -> vector<8x256xf32>
    %54 = vector.shape_cast %53 : vector<8x256xf32> to vector<1x8x256xf32>
    %cst_54 = arith.constant dense<0.000000e+00> : vector<1xf32>
    %55 = vector.multi_reduction <add>, %54, %cst_54 [1, 2] : vector<1x8x256xf32> to vector<1xf32>
    %56 = vector.shape_cast %55 : vector<1xf32> to vector<1x1x1xf32>
    %57 = vector.extract %56[0, 0, 0] : f32 from vector<1x1x1xf32>
    %58 = arith.mulf %53, %53 : vector<8x256xf32>
    %59 = vector.shape_cast %58 : vector<8x256xf32> to vector<1x8x256xf32>
    %cst_55 = arith.constant dense<0.000000e+00> : vector<1xf32>
    %60 = vector.multi_reduction <add>, %59, %cst_55 [1, 2] : vector<1x8x256xf32> to vector<1xf32>
    %61 = vector.shape_cast %60 : vector<1xf32> to vector<1x1x1xf32>
    %62 = vector.extract %61[0, 0, 0] : f32 from vector<1x1x1xf32>
    %cst_56 = arith.constant 2.048000e+03 : f32
    %63 = arith.divf %57, %cst_56 : f32
    %cst_57 = arith.constant 2.048000e+03 : f32
    %64 = arith.divf %62, %cst_57 : f32
    %65 = arith.mulf %63, %63 : f32
    %66 = arith.subf %64, %65 : f32
    %cst_58 = arith.constant 0.000000e+00 : f32
    %67 = arith.maximumf %66, %cst_58 : f32
    %cst_59 = arith.constant 9.99999974E-6 : f32
    %68 = arith.addf %67, %cst_59 : f32
    %69 = math.rsqrt %68 : f32
    %70 = vector.broadcast %63 : f32 to vector<8x256xf32>
    %71 = arith.subf %53, %70 : vector<8x256xf32>
    %72 = vector.broadcast %69 : f32 to vector<8x256xf32>
    %73 = arith.mulf %71, %72 : vector<8x256xf32>
    %c0_60 = arith.constant 0 : index
    %c0_61 = arith.constant 0 : index
    %74 = vector.load %arg4[%c0_60, %c0_61] : memref<8x1xf32, #tpu.memory_space<vmem>>, vector<8x1xf32>
    %75 = vector.broadcast %74 : vector<8x1xf32> to vector<8x256xf32>
    %76 = arith.mulf %73, %75 : vector<8x256xf32>
    %c0_62 = arith.constant 0 : index
    %c0_63 = arith.constant 0 : index
    %77 = vector.load %arg5[%c0_62, %c0_63] : memref<8x1xf32, #tpu.memory_space<vmem>>, vector<8x1xf32>
    %78 = vector.broadcast %77 : vector<8x1xf32> to vector<8x256xf32>
    %79 = arith.addf %76, %78 : vector<8x256xf32>
    %cst_64 = arith.constant 5.000000e-01 : f32
    %80 = vector.broadcast %cst_64 : f32 to vector<8x256xf32>
    %81 = arith.mulf %80, %79 : vector<8x256xf32>
    %cst_65 = arith.constant 0.707106769 : f32
    %82 = vector.broadcast %cst_65 : f32 to vector<8x256xf32>
    %83 = arith.mulf %79, %82 : vector<8x256xf32>
    %84 = math.erf %83 : vector<8x256xf32>
    %cst_66 = arith.constant 1.000000e+00 : f32
    %85 = vector.broadcast %cst_66 : f32 to vector<8x256xf32>
    %86 = arith.addf %85, %84 : vector<8x256xf32>
    %87 = arith.mulf %81, %86 : vector<8x256xf32>
    %cst_67 = arith.constant 0.000000e+00 : f32
    %88 = vector.broadcast %cst_67 : f32 to vector<8x17xf32>
    %c0_68 = arith.constant 0 : index
    %c0_69 = arith.constant 0 : index
    %89 = vector.load %arg12[%c0_68, %c0_69] : memref<8x290xf32, #tpu.memory_space<vmem>>, vector<8x17xf32>
    tpu.vector_store %arg12[%c0_68, %c0_69], %88 {strides = array<i32>} : memref<8x290xf32, #tpu.memory_space<vmem>>, vector<8x17xf32>,
    %c0_70 = arith.constant 0 : index
    %c273_71 = arith.constant 273 : index
    %90 = vector.load %arg12[%c0_70, %c273_71] : memref<8x290xf32, #tpu.memory_space<vmem>>, vector<8x17xf32>
    tpu.vector_store %arg12[%c0_70, %c273_71], %88 {strides = array<i32>} : memref<8x290xf32, #tpu.memory_space<vmem>>, vector<8x17xf32>,
    %c0_72 = arith.constant 0 : index
    %c17_73 = arith.constant 17 : index
    %91 = vector.load %arg12[%c0_72, %c17_73] : memref<8x290xf32, #tpu.memory_space<vmem>>, vector<8x256xf32>
    tpu.vector_store %arg12[%c0_72, %c17_73], %87 {strides = array<i32>} : memref<8x290xf32, #tpu.memory_space<vmem>>, vector<8x256xf32>,
    %c0_74 = arith.constant 0 : index
    %c0_75 = arith.constant 0 : index
    %92 = vector.load %arg12[%c0_74, %c0_75] : memref<8x290xf32, #tpu.memory_space<vmem>>, vector<8x256xf32>
    %c0_76 = arith.constant 0 : index
    %c0_77 = arith.constant 0 : index
    %c0_78 = arith.constant 0 : index
    %93 = vector.load %arg2[%c0_76, %c0_77, %c0_78] : memref<2x1x256xf32, #tpu.memory_space<vmem>>, vector<1x1x256xf32>
    %94 = vector.shape_cast %93 : vector<1x1x256xf32> to vector<1x256xf32>
    %95 = vector.broadcast %94 : vector<1x256xf32> to vector<8x256xf32>
    %96 = arith.mulf %92, %95 : vector<8x256xf32>
    %c0_79 = arith.constant 0 : index
    %c0_80 = arith.constant 0 : index
    %97 = vector.load %arg13[%c0_79, %c0_80] : memref<72x256xf32, #tpu.memory_space<vmem>>, vector<8x256xf32>
    tpu.vector_store %arg13[%c0_79, %c0_80], %96 {strides = array<i32>} : memref<72x256xf32, #tpu.memory_space<vmem>>, vector<8x256xf32>,
    %c0_81 = arith.constant 0 : index
    %c1_82 = arith.constant 1 : index
    %98 = vector.load %arg12[%c0_81, %c1_82] : memref<8x290xf32, #tpu.memory_space<vmem>>, vector<8x256xf32>
    %c8_83 = arith.constant 8 : index
    %c0_84 = arith.constant 0 : index
    %99 = vector.load %arg13[%c8_83, %c0_84] : memref<72x256xf32, #tpu.memory_space<vmem>>, vector<8x256xf32>
    tpu.vector_store %arg13[%c8_83, %c0_84], %98 {strides = array<i32>} : memref<72x256xf32, #tpu.memory_space<vmem>>, vector<8x256xf32>,
    %c0_85 = arith.constant 0 : index
    %c2_86 = arith.constant 2 : index
    %100 = vector.load %arg12[%c0_85, %c2_86] : memref<8x290xf32, #tpu.memory_space<vmem>>, vector<8x256xf32>
    %c1_87 = arith.constant 1 : index
    %c0_88 = arith.constant 0 : index
    %c0_89 = arith.constant 0 : index
    %101 = vector.load %arg2[%c1_87, %c0_88, %c0_89] : memref<2x1x256xf32, #tpu.memory_space<vmem>>, vector<1x1x256xf32>
    %102 = vector.shape_cast %101 : vector<1x1x256xf32> to vector<1x256xf32>
    %103 = vector.broadcast %102 : vector<1x256xf32> to vector<8x256xf32>
    %104 = arith.mulf %100, %103 : vector<8x256xf32>
    %c16_90 = arith.constant 16 : index
    %c0_91 = arith.constant 0 : index
    %105 = vector.load %arg13[%c16_90, %c0_91] : memref<72x256xf32, #tpu.memory_space<vmem>>, vector<8x256xf32>
    tpu.vector_store %arg13[%c16_90, %c0_91], %104 {strides = array<i32>} : memref<72x256xf32, #tpu.memory_space<vmem>>, vector<8x256xf32>,
    %c0_92 = arith.constant 0 : index
    %c16_93 = arith.constant 16 : index
    %106 = vector.load %arg12[%c0_92, %c16_93] : memref<8x290xf32, #tpu.memory_space<vmem>>, vector<8x256xf32>
    %c0_94 = arith.constant 0 : index
    %c0_95 = arith.constant 0 : index
    %c0_96 = arith.constant 0 : index
    %107 = vector.load %arg2[%c0_94, %c0_95, %c0_96] : memref<2x1x256xf32, #tpu.memory_space<vmem>>, vector<1x1x256xf32>
    %108 = vector.shape_cast %107 : vector<1x1x256xf32> to vector<1x256xf32>
    %109 = vector.broadcast %108 : vector<1x256xf32> to vector<8x256xf32>
    %110 = arith.mulf %106, %109 : vector<8x256xf32>
    %c24_97 = arith.constant 24 : index
    %c0_98 = arith.constant 0 : index
    %111 = vector.load %arg13[%c24_97, %c0_98] : memref<72x256xf32, #tpu.memory_space<vmem>>, vector<8x256xf32>
    tpu.vector_store %arg13[%c24_97, %c0_98], %110 {strides = array<i32>} : memref<72x256xf32, #tpu.memory_space<vmem>>, vector<8x256xf32>,
    %c0_99 = arith.constant 0 : index
    %c17_100 = arith.constant 17 : index
    %112 = vector.load %arg12[%c0_99, %c17_100] : memref<8x290xf32, #tpu.memory_space<vmem>>, vector<8x256xf32>
    %c32_101 = arith.constant 32 : index
    %c0_102 = arith.constant 0 : index
    %113 = vector.load %arg13[%c32_101, %c0_102] : memref<72x256xf32, #tpu.memory_space<vmem>>, vector<8x256xf32>
    tpu.vector_store %arg13[%c32_101, %c0_102], %112 {strides = array<i32>} : memref<72x256xf32, #tpu.memory_space<vmem>>, vector<8x256xf32>,
    %c0_103 = arith.constant 0 : index
    %c18_104 = arith.constant 18 : index
    %114 = vector.load %arg12[%c0_103, %c18_104] : memref<8x290xf32, #tpu.memory_space<vmem>>, vector<8x256xf32>
    %c1_105 = arith.constant 1 : index
    %c0_106 = arith.constant 0 : index
    %c0_107 = arith.constant 0 : index
    %115 = vector.load %arg2[%c1_105, %c0_106, %c0_107] : memref<2x1x256xf32, #tpu.memory_space<vmem>>, vector<1x1x256xf32>
    %116 = vector.shape_cast %115 : vector<1x1x256xf32> to vector<1x256xf32>
    %117 = vector.broadcast %116 : vector<1x256xf32> to vector<8x256xf32>
    %118 = arith.mulf %114, %117 : vector<8x256xf32>
    %c40_108 = arith.constant 40 : index
    %c0_109 = arith.constant 0 : index
    %119 = vector.load %arg13[%c40_108, %c0_109] : memref<72x256xf32, #tpu.memory_space<vmem>>, vector<8x256xf32>
    tpu.vector_store %arg13[%c40_108, %c0_109], %118 {strides = array<i32>} : memref<72x256xf32, #tpu.memory_space<vmem>>, vector<8x256xf32>,
    %c0_110 = arith.constant 0 : index
    %c32_111 = arith.constant 32 : index
    %120 = vector.load %arg12[%c0_110, %c32_111] : memref<8x290xf32, #tpu.memory_space<vmem>>, vector<8x256xf32>
    %c0_112 = arith.constant 0 : index
    %c0_113 = arith.constant 0 : index
    %c0_114 = arith.constant 0 : index
    %121 = vector.load %arg2[%c0_112, %c0_113, %c0_114] : memref<2x1x256xf32, #tpu.memory_space<vmem>>, vector<1x1x256xf32>
    %122 = vector.shape_cast %121 : vector<1x1x256xf32> to vector<1x256xf32>
    %123 = vector.broadcast %122 : vector<1x256xf32> to vector<8x256xf32>
    %124 = arith.mulf %120, %123 : vector<8x256xf32>
    %c48_115 = arith.constant 48 : index
    %c0_116 = arith.constant 0 : index
    %125 = vector.load %arg13[%c48_115, %c0_116] : memref<72x256xf32, #tpu.memory_space<vmem>>, vector<8x256xf32>
    tpu.vector_store %arg13[%c48_115, %c0_116], %124 {strides = array<i32>} : memref<72x256xf32, #tpu.memory_space<vmem>>, vector<8x256xf32>,
    %c0_117 = arith.constant 0 : index
    %c33_118 = arith.constant 33 : index
    %126 = vector.load %arg12[%c0_117, %c33_118] : memref<8x290xf32, #tpu.memory_space<vmem>>, vector<8x256xf32>
    %c56_119 = arith.constant 56 : index
    %c0_120 = arith.constant 0 : index
    %127 = vector.load %arg13[%c56_119, %c0_120] : memref<72x256xf32, #tpu.memory_space<vmem>>, vector<8x256xf32>
    tpu.vector_store %arg13[%c56_119, %c0_120], %126 {strides = array<i32>} : memref<72x256xf32, #tpu.memory_space<vmem>>, vector<8x256xf32>,
    %c0_121 = arith.constant 0 : index
    %c34_122 = arith.constant 34 : index
    %128 = vector.load %arg12[%c0_121, %c34_122] : memref<8x290xf32, #tpu.memory_space<vmem>>, vector<8x256xf32>
    %c1_123 = arith.constant 1 : index
    %c0_124 = arith.constant 0 : index
    %c0_125 = arith.constant 0 : index
    %129 = vector.load %arg2[%c1_123, %c0_124, %c0_125] : memref<2x1x256xf32, #tpu.memory_space<vmem>>, vector<1x1x256xf32>
    %130 = vector.shape_cast %129 : vector<1x1x256xf32> to vector<1x256xf32>
    %131 = vector.broadcast %130 : vector<1x256xf32> to vector<8x256xf32>
    %132 = arith.mulf %128, %131 : vector<8x256xf32>
    %c64_126 = arith.constant 64 : index
    %c0_127 = arith.constant 0 : index
    %133 = vector.load %arg13[%c64_126, %c0_127] : memref<72x256xf32, #tpu.memory_space<vmem>>, vector<8x256xf32>
    tpu.vector_store %arg13[%c64_126, %c0_127], %132 {strides = array<i32>} : memref<72x256xf32, #tpu.memory_space<vmem>>, vector<8x256xf32>,
    %c0_128 = arith.constant 0 : index
    %c0_129 = arith.constant 0 : index
    %134 = vector.load %arg6[%c0_128, %c0_129] : memref<8x72xbf16, #tpu.memory_space<vmem>>, vector<8x72xbf16>
    %c0_130 = arith.constant 0 : index
    %c0_131 = arith.constant 0 : index
    %135 = vector.load %arg13[%c0_130, %c0_131] : memref<72x256xf32, #tpu.memory_space<vmem>>, vector<72x256xf32>
    %136 = arith.truncf %135 : vector<72x256xf32> to vector<72x256xbf16>
    %cst_132 = arith.constant dense<0.000000e+00> : vector<8x256xf32>
    %137 = tpu.matmul %134, %136, %cst_132 {dimension_numbers = #tpu.dot_dimension_numbers<[1], [0], [0], [1], [0, 0, 1, 1], [], []>} : vector<8x72xbf16>, vector<72x256xbf16>, vector<8x256xf32> -> vector<8x256xf32>
    %138 = vector.shape_cast %137 : vector<8x256xf32> to vector<1x8x256xf32>
    %cst_133 = arith.constant dense<0.000000e+00> : vector<1xf32>
    %139 = vector.multi_reduction <add>, %138, %cst_133 [1, 2] : vector<1x8x256xf32> to vector<1xf32>
    %140 = vector.shape_cast %139 : vector<1xf32> to vector<1x1x1xf32>
    %141 = vector.extract %140[0, 0, 0] : f32 from vector<1x1x1xf32>
    %142 = arith.mulf %137, %137 : vector<8x256xf32>
    %143 = vector.shape_cast %142 : vector<8x256xf32> to vector<1x8x256xf32>
    %cst_134 = arith.constant dense<0.000000e+00> : vector<1xf32>
    %144 = vector.multi_reduction <add>, %143, %cst_134 [1, 2] : vector<1x8x256xf32> to vector<1xf32>
    %145 = vector.shape_cast %144 : vector<1xf32> to vector<1x1x1xf32>
    %146 = vector.extract %145[0, 0, 0] : f32 from vector<1x1x1xf32>
    %cst_135 = arith.constant 2.048000e+03 : f32
    %147 = arith.divf %141, %cst_135 : f32
    %cst_136 = arith.constant 2.048000e+03 : f32
    %148 = arith.divf %146, %cst_136 : f32
    %149 = arith.mulf %147, %147 : f32
    %150 = arith.subf %148, %149 : f32
    %cst_137 = arith.constant 0.000000e+00 : f32
    %151 = arith.maximumf %150, %cst_137 : f32
    %cst_138 = arith.constant 9.99999974E-6 : f32
    %152 = arith.addf %151, %cst_138 : f32
    %153 = math.rsqrt %152 : f32
    %154 = vector.broadcast %147 : f32 to vector<8x256xf32>
    %155 = arith.subf %137, %154 : vector<8x256xf32>
    %156 = vector.broadcast %153 : f32 to vector<8x256xf32>
    %157 = arith.mulf %155, %156 : vector<8x256xf32>
    %c0_139 = arith.constant 0 : index
    %c0_140 = arith.constant 0 : index
    %158 = vector.load %arg7[%c0_139, %c0_140] : memref<8x1xf32, #tpu.memory_space<vmem>>, vector<8x1xf32>
    %159 = vector.broadcast %158 : vector<8x1xf32> to vector<8x256xf32>
    %160 = arith.mulf %157, %159 : vector<8x256xf32>
    %c0_141 = arith.constant 0 : index
    %c0_142 = arith.constant 0 : index
    %161 = vector.load %arg8[%c0_141, %c0_142] : memref<8x1xf32, #tpu.memory_space<vmem>>, vector<8x1xf32>
    %162 = vector.broadcast %161 : vector<8x1xf32> to vector<8x256xf32>
    %163 = arith.addf %160, %162 : vector<8x256xf32>
    %c0_143 = arith.constant 0 : index
    %c0_144 = arith.constant 0 : index
    %c0_145 = arith.constant 0 : index
    %164 = vector.load %arg9[%c0_143, %c0_144, %c0_145] : memref<1x8x256xf32, #tpu.memory_space<vmem>>, vector<1x8x256xf32>
    %165 = vector.shape_cast %164 : vector<1x8x256xf32> to vector<8x256xf32>
    %166 = vector.shape_cast %163 : vector<8x256xf32> to vector<1x8x256xf32>
    tpu.vector_store %arg9[%c0_143, %c0_144, %c0_145], %166 {strides = array<i32>} : memref<1x8x256xf32, #tpu.memory_space<vmem>>, vector<1x8x256xf32>,
    return
  }
  func.func @transform_0(%arg0: i32) -> (i32, i32, i32) {
    %c0_i32 = arith.constant 0 : i32
    %c0_i32_0 = arith.constant 0 : i32
    %c0_i32_1 = arith.constant 0 : i32
    return %arg0, %c0_i32, %c0_i32_0 : i32, i32, i32
  }
  func.func @transform_1(%arg0: i32) -> (i32, i32, i32) {
    %c0_i32 = arith.constant 0 : i32
    %c0_i32_0 = arith.constant 0 : i32
    %c0_i32_1 = arith.constant 0 : i32
    %c0_i32_2 = arith.constant 0 : i32
    return %c0_i32, %c0_i32_0, %c0_i32_1 : i32, i32, i32
  }
  func.func @transform_2(%arg0: i32) -> (i32, i32) {
    %c0_i32 = arith.constant 0 : i32
    %c0_i32_0 = arith.constant 0 : i32
    %c0_i32_1 = arith.constant 0 : i32
    return %c0_i32, %c0_i32_0 : i32, i32
  }
  func.func @transform_3(%arg0: i32) -> (i32, i32) {
    %c0_i32 = arith.constant 0 : i32
    %c0_i32_0 = arith.constant 0 : i32
    %c0_i32_1 = arith.constant 0 : i32
    return %c0_i32, %c0_i32_0 : i32, i32
  }
  func.func @transform_4(%arg0: i32) -> (i32, i32) {
    %c0_i32 = arith.constant 0 : i32
    %c0_i32_0 = arith.constant 0 : i32
    %c0_i32_1 = arith.constant 0 : i32
    return %c0_i32, %c0_i32_0 : i32, i32
  }
  func.func @transform_5(%arg0: i32) -> (i32, i32) {
    %c0_i32 = arith.constant 0 : i32
    %c0_i32_0 = arith.constant 0 : i32
    %c0_i32_1 = arith.constant 0 : i32
    return %c0_i32, %c0_i32_0 : i32, i32
  }
  func.func @transform_6(%arg0: i32) -> (i32, i32) {
    %c0_i32 = arith.constant 0 : i32
    %c0_i32_0 = arith.constant 0 : i32
    %c0_i32_1 = arith.constant 0 : i32
    return %c0_i32, %c0_i32_0 : i32, i32
  }
  func.func @transform_7(%arg0: i32) -> (i32, i32) {
    %c0_i32 = arith.constant 0 : i32
    %c0_i32_0 = arith.constant 0 : i32
    %c0_i32_1 = arith.constant 0 : i32
    return %c0_i32, %c0_i32_0 : i32, i32
  }
  func.func @transform_8(%arg0: i32) -> (i32, i32, i32) {
    %c0_i32 = arith.constant 0 : i32
    %c0_i32_0 = arith.constant 0 : i32
    %c0_i32_1 = arith.constant 0 : i32
    return %arg0, %c0_i32, %c0_i32_0 : i32, i32, i32
  }
}

</mosaic_0001>

<llo_original>
// kernel: tpu_custom_call.1
$region0: #{tpu_custom_call.1}
  #allocation0 [shape = 'u32[]', space=smem, size = 0x4, offset = 0x4, fixed_abs, tag = 'smem constant byte address 0x4 - core index']
  #allocation1 [shape = 'u32[144,128]{1,0:T(1,128)}', space=vmem, size = 0x12000, scoped, tag = 'internal scratch']
  #allocation2 [shape = 'f32[8,290]{1,0:T(8,128)}', space=vmem, size = 0x3000, scoped, tag = 'scratch operand']
  #allocation3 [shape = 'f32[72,256]{1,0:T(8,128)}', space=vmem, size = 0x12000, scoped, tag = 'scratch operand']
  #allocation4 [shape = 'f32[8,290]{1,0:T(8,128)}', space=vmem, size = 0x3000, scoped, tag = 'scratch operand']
  #allocation5 [shape = 'f32[72,256]{1,0:T(8,128)}', space=vmem, size = 0x12000, scoped, tag = 'scratch operand']
  %s0 = inlined_call_operand.vmem [shape: f32[2,4,256], index: 0, kind: input, shape index: {}]
  %s1 = inlined_call_operand.vmem [shape: f32[2,1,256], index: 1, kind: input, shape index: {}]
  %s2 = inlined_call_operand.vmem [shape: bf16[8,72], index: 2, kind: input, shape index: {}]
  %s3 = inlined_call_operand.vmem [shape: f32[8,1], index: 3, kind: input, shape index: {}]
  %s4 = inlined_call_operand.vmem [shape: f32[8,1], index: 4, kind: input, shape index: {}]
  %s5 = inlined_call_operand.vmem [shape: bf16[8,72], index: 5, kind: input, shape index: {}]
  %s6 = inlined_call_operand.vmem [shape: f32[8,1], index: 6, kind: input, shape index: {}]
  %s7 = inlined_call_operand.vmem [shape: f32[8,1], index: 7, kind: input, shape index: {}]
  %s8 = inlined_call_operand.hbm [shape: f32[2,8,256], index: 8, kind: output, shape index: {}]
  %s9 = sld [smem:[#allocation0]]
  $region65: #{tpu_custom_call.1} parent=0
    _
  %s11 = ssub.s32 1, %s9
  %s12 = scalar_select 0, %s11, %s9
  $region1: #{tpu_custom_call.1} parent=0
    #allocation6 [shape = 'u8[16384]{0}', space=vmem, size = 0x4000, scoped, tag = 'output window, operand 0']
    #allocation7 [shape = 's32[2]{0}', space=sflag, size = 0x8, scoped, tag = 'scoped memory for tpu_custom_call.1']
    %13 = vsyncpa [#allocation7], 0
    %s14 = scalar_lea.sflag [#allocation7], 1
    %15 = vsyncpa %s14, 0
    loop: start=0, step=1, limit=4
    $region2: #{tpu_custom_call.1} parent=1 // loop_pre_header
      _
    $region3: #{tpu_custom_call.1} parent=1 // loop_header
      %s17 = sphi 0, %s21
      %p18 = scmp.ge.s32.totalorder %s17, 4
      %s27 = sphi 0, %s29
      %s30 = sphi 0, %s27
      %s31 = sphi 0, %s30
      %s47 = sphi 0, %s31
      %s51 = sphi 0, %s51
      %s53 = sphi 0, %s51
      %s54 = sphi 0, %s53
      %s68 = sphi 0, %s54
      %s72 = sphi 0, %s72
      %s74 = sphi 0, %s72
      %s75 = sphi 0, %s74
      %s89 = sphi 0, %s75
      %s93 = sphi 0, %s93
      %s95 = sphi 0, %s93
      %s96 = sphi 0, %s95
      %s110 = sphi 0, %s96
      %s114 = sphi 0, %s114
      %s116 = sphi 0, %s114
      %s117 = sphi 0, %s116
      %s131 = sphi 0, %s117
      %s135 = sphi 0, %s135
      %s137 = sphi 0, %s135
      %s138 = sphi 0, %s137
      %s152 = sphi 0, %s138
      %s156 = sphi 0, %s156
      %s158 = sphi 0, %s156
      %s159 = sphi 0, %s158
      %s173 = sphi 0, %s159
      %s177 = sphi 0, %s177
      %s179 = sphi 0, %s177
      %s180 = sphi 0, %s179
      %s194 = sphi 0, %s180
      %s200 = sphi 0, %s202
      %s203 = sphi 0, %s200
      %s204 = sphi 0, %s203
      %s220 = sphi 0, %s204
    $region4: #{tpu_custom_call.1} parent=1 // loop_header_branch
      %20 = sbr.rel (%p18) target = $region8
    $region5: #{tpu_custom_call.1} parent=1 // loop_body
      %s22 = ssub.s32 %s17, 1
      %s23 = ssub.s32 %s17, 2
      %s24 = sadd.s32 %s17, 1
      %s25 = ssub.s32 %s17, %s24
      %p26 = scmp.eq.s32.totalorder %s25, 0
      %s28 = sadd.s32 %s27, 1
      %s29 = scalar_select %p26, %s27, %s28
      %p32 = pneg %p26
      %p33 = scmp.eq.s32.totalorder %s17, 1
      %p34 = por %p32, %p33
      %p35 = scmp.ne.s32.totalorder %s27, %s30
      %p36 = scmp.eq.s32.totalorder %s17, 0
      %p37 = por %p35, %p36
      %p38 = scmp.ne.s32.totalorder %s27, %s30
      %p39 = scmp.eq.s32.totalorder %s22, 1
      %p40 = por %p38, %p39
      %p41 = scmp.ne.s32.totalorder %s30, %s31
      %p42 = scmp.eq.s32.totalorder %s22, 0
      %p43 = por %p41, %p42
      %p44 = scmp.ne.s32.totalorder %s30, %s31
      %p45 = scmp.eq.s32.totalorder %s23, 1
      %p46 = por %p44, %p45
      %p48 = scmp.ne.s32.totalorder %s31, %s47
      %p49 = scmp.eq.s32.totalorder %s23, 0
      %p50 = por %p48, %p49
      %s52 = sadd.s32 %s51, 1
      %p55 = scmp.eq.s32.totalorder %s17, 1
      %p56 = scmp.ne.s32.totalorder %s51, %s53
      %p57 = scmp.eq.s32.totalorder %s17, 0
      %p58 = por %p56, %p57
      %p59 = scmp.ne.s32.totalorder %s51, %s53
      %p60 = scmp.eq.s32.totalorder %s22, 1
      %p61 = por %p59, %p60
      %p62 = scmp.ne.s32.totalorder %s53, %s54
      %p63 = scmp.eq.s32.totalorder %s22, 0
      %p64 = por %p62, %p63
      %p65 = scmp.ne.s32.totalorder %s53, %s54
      %p66 = scmp.eq.s32.totalorder %s23, 1
      %p67 = por %p65, %p66
      %p69 = scmp.ne.s32.totalorder %s54, %s68
      %p70 = scmp.eq.s32.totalorder %s23, 0
      %p71 = por %p69, %p70
      %s73 = sadd.s32 %s72, 1
      %p76 = scmp.eq.s32.totalorder %s17, 1
      %p77 = scmp.ne.s32.totalorder %s72, %s74
      %p78 = scmp.eq.s32.totalorder %s17, 0
      %p79 = por %p77, %p78
      %p80 = scmp.ne.s32.totalorder %s72, %s74
      %p81 = scmp.eq.s32.totalorder %s22, 1
      %p82 = por %p80, %p81
      %p83 = scmp.ne.s32.totalorder %s74, %s75
      %p84 = scmp.eq.s32.totalorder %s22, 0
      %p85 = por %p83, %p84
      %p86 = scmp.ne.s32.totalorder %s74, %s75
      %p87 = scmp.eq.s32.totalorder %s23, 1
      %p88 = por %p86, %p87
      %p90 = scmp.ne.s32.totalorder %s75, %s89
      %p91 = scmp.eq.s32.totalorder %s23, 0
      %p92 = por %p90, %p91
      %s94 = sadd.s32 %s93, 1
      %p97 = scmp.eq.s32.totalorder %s17, 1
      %p98 = scmp.ne.s32.totalorder %s93, %s95
      %p99 = scmp.eq.s32.totalorder %s17, 0
      %p100 = por %p98, %p99
      %p101 = scmp.ne.s32.totalorder %s93, %s95
      %p102 = scmp.eq.s32.totalorder %s22, 1
      %p103 = por %p101, %p102
      %p104 = scmp.ne.s32.totalorder %s95, %s96
      %p105 = scmp.eq.s32.totalorder %s22, 0
      %p106 = por %p104, %p105
      %p107 = scmp.ne.s32.totalorder %s95, %s96
      %p108 = scmp.eq.s32.totalorder %s23, 1
      %p109 = por %p107, %p108
      %p111 = scmp.ne.s32.totalorder %s96, %s110
      %p112 = scmp.eq.s32.totalorder %s23, 0
      %p113 = por %p111, %p112
      %s115 = sadd.s32 %s114, 1
      %p118 = scmp.eq.s32.totalorder %s17, 1
      %p119 = scmp.ne.s32.totalorder %s114, %s116
      %p120 = scmp.eq.s32.totalorder %s17, 0
      %p121 = por %p119, %p120
      %p122 = scmp.ne.s32.totalorder %s114, %s116
      %p123 = scmp.eq.s32.totalorder %s22, 1
      %p124 = por %p122, %p123
      %p125 = scmp.ne.s32.totalorder %s116, %s117
      %p126 = scmp.eq.s32.totalorder %s22, 0
      %p127 = por %p125, %p126
      %p128 = scmp.ne.s32.totalorder %s116, %s117
      %p129 = scmp.eq.s32.totalorder %s23, 1
      %p130 = por %p128, %p129
      %p132 = scmp.ne.s32.totalorder %s117, %s131
      %p133 = scmp.eq.s32.totalorder %s23, 0
      %p134 = por %p132, %p133
      %s136 = sadd.s32 %s135, 1
      %p139 = scmp.eq.s32.totalorder %s17, 1
      %p140 = scmp.ne.s32.totalorder %s135, %s137
      %p141 = scmp.eq.s32.totalorder %s17, 0
      %p142 = por %p140, %p141
      %p143 = scmp.ne.s32.totalorder %s135, %s137
      %p144 = scmp.eq.s32.totalorder %s22, 1
      %p145 = por %p143, %p144
      %p146 = scmp.ne.s32.totalorder %s137, %s138
      %p147 = scmp.eq.s32.totalorder %s22, 0
      %p148 = por %p146, %p147
      %p149 = scmp.ne.s32.totalorder %s137, %s138
      %p150 = scmp.eq.s32.totalorder %s23, 1
      %p151 = por %p149, %p150
      %p153 = scmp.ne.s32.totalorder %s138, %s152
      %p154 = scmp.eq.s32.totalorder %s23, 0
      %p155 = por %p153, %p154
      %s157 = sadd.s32 %s156, 1
      %p160 = scmp.eq.s32.totalorder %s17, 1
      %p161 = scmp.ne.s32.totalorder %s156, %s158
      %p162 = scmp.eq.s32.totalorder %s17, 0
      %p163 = por %p161, %p162
      %p164 = scmp.ne.s32.totalorder %s156, %s158
      %p165 = scmp.eq.s32.totalorder %s22, 1
      %p166 = por %p164, %p165
      %p167 = scmp.ne.s32.totalorder %s158, %s159
      %p168 = scmp.eq.s32.totalorder %s22, 0
      %p169 = por %p167, %p168
      %p170 = scmp.ne.s32.totalorder %s158, %s159
      %p171 = scmp.eq.s32.totalorder %s23, 1
      %p172 = por %p170, %p171
      %p174 = scmp.ne.s32.totalorder %s159, %s173
      %p175 = scmp.eq.s32.totalorder %s23, 0
      %p176 = por %p174, %p175
      %s178 = sadd.s32 %s177, 1
      %p181 = scmp.eq.s32.totalorder %s17, 1
      %p182 = scmp.ne.s32.totalorder %s177, %s179
      %p183 = scmp.eq.s32.totalorder %s17, 0
      %p184 = por %p182, %p183
      %p185 = scmp.ne.s32.totalorder %s177, %s179
      %p186 = scmp.eq.s32.totalorder %s22, 1
      %p187 = por %p185, %p186
      %p188 = scmp.ne.s32.totalorder %s179, %s180
      %p189 = scmp.eq.s32.totalorder %s22, 0
      %p190 = por %p188, %p189
      %p191 = scmp.ne.s32.totalorder %s179, %s180
      %p192 = scmp.eq.s32.totalorder %s23, 1
      %p193 = por %p191, %p192
      %p195 = scmp.ne.s32.totalorder %s180, %s194
      %p196 = scmp.eq.s32.totalorder %s23, 0
      %p197 = por %p195, %p196
      %s198 = ssub.s32 %s17, %s24
      %p199 = scmp.eq.s32.totalorder %s198, 0
      %s201 = sadd.s32 %s200, 1
      %s202 = scalar_select %p199, %s200, %s201
      %p205 = pneg %p199
      %p206 = scmp.eq.s32.totalorder %s17, 1
      %p207 = por %p205, %p206
      %p208 = scmp.ne.s32.totalorder %s200, %s203
      %p209 = scmp.eq.s32.totalorder %s17, 0
      %p210 = por %p208, %p209
      %p211 = scmp.ne.s32.totalorder %s200, %s203
      %p212 = scmp.eq.s32.totalorder %s22, 1
      %p213 = por %p211, %p212
      %p214 = scmp.ne.s32.totalorder %s203, %s204
      %p215 = scmp.eq.s32.totalorder %s22, 0
      %p216 = por %p214, %p215
      %p217 = scmp.ne.s32.totalorder %s203, %s204
      %p218 = scmp.eq.s32.totalorder %s23, 1
      %p219 = por %p217, %p218
      %p221 = scmp.ne.s32.totalorder %s204, %s220
      %p222 = scmp.eq.s32.totalorder %s23, 0
      %p223 = por %p221, %p222
      %p224 = scmp.le.s32.totalorder 1, %s17
      %p225 = scmp.lt.s32.totalorder %s17, 3
      %p226 = pnand %p224, %p225
      %p227 = pneg %p226
      // Predicated region
      $region9: #{tpu_custom_call.1} parent=5 // pred_check
        _
      $region10: #{tpu_custom_call.1} parent=5 // pred_check_branch
        %229 = sbr.rel (%p226) target = $region12
      $region11: #{tpu_custom_call.1} parent=5 // pred_region
        %s230 = ssub.s32 %s17, 1
        // Predicated region
        $region13: #{tpu_custom_call.1} parent=11 // pred_check
          %p231 = pneg %p64
        $region14: #{tpu_custom_call.1} parent=11 // pred_check_branch
          %233 = sbr.rel (%p231) target = $region16
        $region15: #{tpu_custom_call.1} parent=11 // pred_region
          _
        $region16: #{tpu_custom_call.1} parent=11 // pred_fallthru
          _
        // Predicated region
        $region17: #{tpu_custom_call.1} parent=11 // pred_check
          %p234 = pneg %p85
        $region18: #{tpu_custom_call.1} parent=11 // pred_check_branch
          %236 = sbr.rel (%p234) target = $region20
        $region19: #{tpu_custom_call.1} parent=11 // pred_region
          _
        $region20: #{tpu_custom_call.1} parent=11 // pred_fallthru
          _
        // Predicated region
        $region21: #{tpu_custom_call.1} parent=11 // pred_check
          %p237 = pneg %p106
        $region22: #{tpu_custom_call.1} parent=11 // pred_check_branch
          %239 = sbr.rel (%p237) target = $region24
        $region23: #{tpu_custom_call.1} parent=11 // pred_region
          _
        $region24: #{tpu_custom_call.1} parent=11 // pred_fallthru
          _
        // Predicated region
        $region25: #{tpu_custom_call.1} parent=11 // pred_check
          %p240 = pneg %p127
        $region26: #{tpu_custom_call.1} parent=11 // pred_check_branch
          %242 = sbr.rel (%p240) target = $region28
        $region27: #{tpu_custom_call.1} parent=11 // pred_region
          _
        $region28: #{tpu_custom_call.1} parent=11 // pred_fallthru
          _
        // Predicated region
        $region29: #{tpu_custom_call.1} parent=11 // pred_check
          %p243 = pneg %p148
        $region30: #{tpu_custom_call.1} parent=11 // pred_check_branch
          %245 = sbr.rel (%p243) target = $region32
        $region31: #{tpu_custom_call.1} parent=11 // pred_region
          _
        $region32: #{tpu_custom_call.1} parent=11 // pred_fallthru
          _
        // Predicated region
        $region33: #{tpu_custom_call.1} parent=11 // pred_check
          %p246 = pneg %p169
        $region34: #{tpu_custom_call.1} parent=11 // pred_check_branch
          %248 = sbr.rel (%p246) target = $region36
        $region35: #{tpu_custom_call.1} parent=11 // pred_region
          _
        $region36: #{tpu_custom_call.1} parent=11 // pred_fallthru
          _
        // Predicated region
        $region37: #{tpu_custom_call.1} parent=11 // pred_check
          %p249 = pneg %p190
        $region38: #{tpu_custom_call.1} parent=11 // pred_check_branch
          %251 = sbr.rel (%p249) target = $region40
        $region39: #{tpu_custom_call.1} parent=11 // pred_region
          _
        $region40: #{tpu_custom_call.1} parent=11 // pred_fallthru
          _
      $region12: #{tpu_custom_call.1} parent=5 // pred_fallthru
        _
      %p252 = scmp.lt.s32.totalorder %s17, 2
      // Predicated region
      $region41: #{tpu_custom_call.1} parent=5 // pred_check
        %p253 = pneg %p252
      $region42: #{tpu_custom_call.1} parent=5 // pred_check_branch
        %255 = sbr.rel (%p253) target = $region44
      $region43: #{tpu_custom_call.1} parent=5 // pred_region
        // Predicated region
        $region45: #{tpu_custom_call.1} parent=43 // pred_check
          %p256 = pneg %p37
        $region46: #{tpu_custom_call.1} parent=43 // pred_check_branch
          %258 = sbr.rel (%p256) target = $region48
        $region47: #{tpu_custom_call.1} parent=43 // pred_region
          %p259 = scmp.lt.s32.totalorder %s17, 1
          %s260 = scalar_select %p259, %s17, 1
          %s261 = smul.addr %s260, 2
          %s262 = smul.addr %s261, 4
          %s263 = scalar_lea.vmem %s0, %s262
        $region48: #{tpu_custom_call.1} parent=43 // pred_fallthru
          _
      $region44: #{tpu_custom_call.1} parent=5 // pred_fallthru
        _
      %p264 = scmp.le.s32.totalorder 1, %s17
      %p265 = scmp.lt.s32.totalorder %s17, 3
      %p266 = pnand %p264, %p265
      %p267 = pneg %p266
      // Predicated region
      $region49: #{tpu_custom_call.1} parent=5 // pred_check
        _
      $region50: #{tpu_custom_call.1} parent=5 // pred_check_branch
        %269 = sbr.rel (%p266) target = $region52
      $region51: #{tpu_custom_call.1} parent=5 // pred_region
        %s270 = ssub.s32 %s17, 1
        %p271 = scmp.lt.s32.totalorder %s22, 1
        %s272 = scalar_select %p271, %s22, 1
        %s273 = smul.addr %s272, 2
        %s274 = smul.addr %s273, 4
        %s275 = scalar_lea.vmem %s0, %s274
        %p276 = pneg %p43
        %p277 = pneg %p40
        %p278 = pneg %p64
        %p279 = pneg %p61
        %p280 = pneg %p85
        %p281 = pneg %p82
        %p282 = pneg %p106
        %p283 = pneg %p103
        %p284 = pneg %p127
        %p285 = pneg %p124
        %p286 = pneg %p148
        %p287 = pneg %p145
        %p288 = pneg %p169
        %p289 = pneg %p166
        %p290 = pneg %p190
        %p291 = pneg %p187
        %p292 = pneg %p216
        %p293 = pneg %p213
        %s294 = sand.u32 %s203, 1
        %s295 = scalar_lea.sflag [#allocation7], %s294
        %s296 = sand.u32 %s203, 1
        %s297 = smul.addr %s296, 16
        %s298 = scalar_lea.vmem [#allocation6], %s297
        %p299 = scmp.lt.s32.totalorder %s22, 1
        %s300 = scalar_select %p299, %s22, 1
        %s301 = smul.addr %s300, 2
        %s302 = smul.addr %s301, 4
        %s303 = scalar_lea.vmem %s0, %s302
        %v305 = vld [vmem:[%s303] sm:$0xff]
        %vm306 = vcmask 138240
        %307 = vst.msk [vmem:[#allocation2] sm:$0xff] %vm306, 0.0
        %vm308 = vcmask 277640
        %309 = vst.msk [vmem:[#allocation2 + $0x10] sm:$0xff] %vm308, 0.0
        %vm310 = vcmask 1047692
        %311 = vst.msk [vmem:[#allocation2] sm:$0xf0] %vm310, 0.0
        %312 = vst [vmem:[#allocation2 + $0x8] sm:$0xf0] 0.0
        %vm313 = vcmask 138244
        %314 = vst.msk [vmem:[#allocation2 + $0x10] sm:$0xf0] %vm313, 0.0
        %v316 = vcombine.high %v305, %v305
        %317 = vrot.lane.b32.xlu0 %v305, 17
        %v318 = vpop.permute.xlu0 %317
        %319 = vrot.lane.b32.xlu0 %v316, 17
        %v320 = vpop.permute.xlu0 %319
        %v321 = vsel %vm306, %v318, %v320
        %vm325 = vcmask 1043592
        %326 = vst.msk [vmem:[#allocation2] sm:$0xf] %vm325, %v318
        %327 = vst [vmem:[#allocation2 + $0x8] sm:$0xf] %v321
        %vm328 = vcmask 134144
        %329 = vst.msk [vmem:[#allocation2 + $0x10] sm:$0xf] %vm328, %v320
        %v330 = vld [vmem:[#allocation2] sm:$0xff]
        %v331 = vld [vmem:[#allocation2 + $0x8] sm:$0xff]
        %v332 = vld [vmem:[%s1] sm:$0x3]
        %v334 = vlaneseq
        %v335 = vshrl.u32 %v334, 7
        %v336 = vsub.s32 0, %v335
        %v337 = vrot.slane %v332, %v336
        %v338 = vlaneseq
        %v339 = vshrl.u32 %v338, 7
        %v340 = vsub.s32 1, %v339
        %v341 = vrot.slane %v332, %v340
        %v344 = vmul.f32 %v330, %v337
        %v345 = vmul.f32 %v331, %v341
        %346 = vst [vmem:[#allocation3] sm:$0xff] %v344
        %347 = vst [vmem:[#allocation3 + $0x8] sm:$0xff] %v345
        %v348 = vld [vmem:[#allocation2] sm:$0xff]
        %v349 = vld [vmem:[#allocation2 + $0x8] sm:$0xff]
        %v350 = vld [vmem:[#allocation2 + $0x10] sm:$0xff]
        %354 = vrot.lane.b32.xlu0 %v348, 127
        %v355 = vpop.permute.xlu0 %354
        %356 = vrot.lane.b32.xlu0 %v349, 127
        %v357 = vpop.permute.xlu0 %356
        %358 = vrot.lane.b32.xlu0 %v350, 127
        %v359 = vpop.permute.xlu0 %358
        %vm360 = vcmask 1039360
        %v361 = vsel %vm360, %v355, %v357
        %v362 = vsel %vm360, %v357, %v359
        %365 = vst [vmem:[#allocation3 + $0x10] sm:$0xff] %v361
        %366 = vst [vmem:[#allocation3 + $0x18] sm:$0xff] %v362
        %v367 = vld [vmem:[#allocation2] sm:$0xff]
        %v368 = vld [vmem:[#allocation2 + $0x8] sm:$0xff]
        %v369 = vld [vmem:[#allocation2 + $0x10] sm:$0xff]
        %s370 = scalar_lea.vmem %s1, 2
        %v371 = vld [vmem:[%s370] sm:$0x3]
        %v373 = vlaneseq
        %v374 = vshrl.u32 %v373, 7
        %v375 = vsub.s32 0, %v374
        %v376 = vrot.slane %v371, %v375
        %v377 = vlaneseq
        %v378 = vshrl.u32 %v377, 7
        %v379 = vsub.s32 1, %v378
        %v380 = vrot.slane %v371, %v379
        %381 = vrot.lane.b32.xlu0 %v376, 2
        %v382 = vpop.permute.xlu0 %381
        %383 = vrot.lane.b32.xlu0 %v380, 2
        %v384 = vpop.permute.xlu0 %383
        %vm385 = vcmask 15360
        %v386 = vsel %vm385, %v382, %v384
        %v390 = vmul.f32 %v367, %v382
        %v391 = vmul.f32 %v368, %v386
        %v392 = vmul.f32 %v369, %v384
        %396 = vrot.lane.b32.xlu0 %v390, 126
        %v397 = vpop.permute.xlu0 %396
        %398 = vrot.lane.b32.xlu0 %v391, 126
        %v399 = vpop.permute.xlu0 %398
        %400 = vrot.lane.b32.xlu0 %v392, 126
        %v401 = vpop.permute.xlu0 %400
        %vm402 = vcmask 1031168
        %v403 = vsel %vm402, %v397, %v399
        %v404 = vsel %vm402, %v399, %v401
        %407 = vst [vmem:[#allocation3 + $0x20] sm:$0xff] %v403
        %408 = vst [vmem:[#allocation3 + $0x28] sm:$0xff] %v404
        %v409 = vld [vmem:[#allocation2] sm:$0xff]
        %v410 = vld [vmem:[#allocation2 + $0x8] sm:$0xff]
        %v411 = vld [vmem:[#allocation2 + $0x10] sm:$0xff]
        %v412 = vld [vmem:[%s1] sm:$0x3]
        %v414 = vlaneseq
        %v415 = vshrl.u32 %v414, 7
        %v416 = vsub.s32 0, %v415
        %v417 = vrot.slane %v412, %v416
        %v418 = vlaneseq
        %v419 = vshrl.u32 %v418, 7
        %v420 = vsub.s32 1, %v419
        %v421 = vrot.slane %v412, %v420
        %422 = vrot.lane.b32.xlu0 %v417, 16
        %v423 = vpop.permute.xlu0 %422
        %424 = vrot.lane.b32.xlu0 %v421, 16
        %v425 = vpop.permute.xlu0 %424
        %vm426 = vcmask 130048
        %v427 = vsel %vm426, %v423, %v425
        %v431 = vmul.f32 %v409, %v423
        %v432 = vmul.f32 %v410, %v427
        %v433 = vmul.f32 %v411, %v425
        %437 = vrot.lane.b32.xlu0 %v431, 112
        %v438 = vpop.permute.xlu0 %437
        %439 = vrot.lane.b32.xlu0 %v432, 112
        %v440 = vpop.permute.xlu0 %439
        %441 = vrot.lane.b32.xlu0 %v433, 112
        %v442 = vpop.permute.xlu0 %441
        %vm443 = vcmask 916480
        %v444 = vsel %vm443, %v438, %v440
        %v445 = vsel %vm443, %v440, %v442
        %448 = vst [vmem:[#allocation3 + $0x30] sm:$0xff] %v444
        %449 = vst [vmem:[#allocation3 + $0x38] sm:$0xff] %v445
        %v450 = vld [vmem:[#allocation2] sm:$0xff]
        %v451 = vld [vmem:[#allocation2 + $0x8] sm:$0xff]
        %v452 = vld [vmem:[#allocation2 + $0x10] sm:$0xff]
        %456 = vrot.lane.b32.xlu0 %v450, 111
        %v457 = vpop.permute.xlu0 %456
        %458 = vrot.lane.b32.xlu0 %v451, 111
        %v459 = vpop.permute.xlu0 %458
        %460 = vrot.lane.b32.xlu0 %v452, 111
        %v461 = vpop.permute.xlu0 %460
        %vm462 = vcmask 908288
        %v463 = vsel %vm462, %v457, %v459
        %v464 = vsel %vm462, %v459, %v461
        %467 = vst [vmem:[#allocation3 + $0x40] sm:$0xff] %v463
        %468 = vst [vmem:[#allocation3 + $0x48] sm:$0xff] %v464
        %v469 = vld [vmem:[#allocation2] sm:$0xff]
        %v470 = vld [vmem:[#allocation2 + $0x8] sm:$0xff]
        %v471 = vld [vmem:[#allocation2 + $0x10] sm:$0xff]
        %v472 = vld [vmem:[%s370] sm:$0x3]
        %v474 = vlaneseq
        %v475 = vshrl.u32 %v474, 7
        %v476 = vsub.s32 0, %v475
        %v477 = vrot.slane %v472, %v476
        %v478 = vlaneseq
        %v479 = vshrl.u32 %v478, 7
        %v480 = vsub.s32 1, %v479
        %v481 = vrot.slane %v472, %v480
        %482 = vrot.lane.b32.xlu0 %v477, 18
        %v483 = vpop.permute.xlu0 %482
        %484 = vrot.lane.b32.xlu0 %v481, 18
        %v485 = vpop.permute.xlu0 %484
        %vm486 = vcmask 146432
        %v487 = vsel %vm486, %v483, %v485
        %v491 = vmul.f32 %v469, %v483
        %v492 = vmul.f32 %v470, %v487
        %v493 = vmul.f32 %v471, %v485
        %497 = vrot.lane.b32.xlu0 %v491, 110
        %v498 = vpop.permute.xlu0 %497
        %499 = vrot.lane.b32.xlu0 %v492, 110
        %v500 = vpop.permute.xlu0 %499
        %501 = vrot.lane.b32.xlu0 %v493, 110
        %v502 = vpop.permute.xlu0 %501
        %vm503 = vcmask 900096
        %v504 = vsel %vm503, %v498, %v500
        %v505 = vsel %vm503, %v500, %v502
        %508 = vst [vmem:[#allocation3 + $0x50] sm:$0xff] %v504
        %509 = vst [vmem:[#allocation3 + $0x58] sm:$0xff] %v505
        %v510 = vld [vmem:[#allocation2] sm:$0xff]
        %v511 = vld [vmem:[#allocation2 + $0x8] sm:$0xff]
        %v512 = vld [vmem:[#allocation2 + $0x10] sm:$0xff]
        %v513 = vld [vmem:[%s1] sm:$0x3]
        %v515 = vlaneseq
        %v516 = vshrl.u32 %v515, 7
        %v517 = vsub.s32 0, %v516
        %v518 = vrot.slane %v513, %v517
        %v519 = vlaneseq
        %v520 = vshrl.u32 %v519, 7
        %v521 = vsub.s32 1, %v520
        %v522 = vrot.slane %v513, %v521
        %523 = vrot.lane.b32.xlu0 %v518, 32
        %v524 = vpop.permute.xlu0 %523
        %525 = vrot.lane.b32.xlu0 %v522, 32
        %v526 = vpop.permute.xlu0 %525
        %vm527 = vcmask 261120
        %v528 = vsel %vm527, %v524, %v526
        %v532 = vmul.f32 %v510, %v524
        %v533 = vmul.f32 %v511, %v528
        %v534 = vmul.f32 %v512, %v526
        %538 = vrot.lane.b32.xlu0 %v532, 96
        %v539 = vpop.permute.xlu0 %538
        %540 = vrot.lane.b32.xlu0 %v533, 96
        %v541 = vpop.permute.xlu0 %540
        %542 = vrot.lane.b32.xlu0 %v534, 96
        %v543 = vpop.permute.xlu0 %542
        %vm544 = vcmask 785408
        %v545 = vsel %vm544, %v539, %v541
        %v546 = vsel %vm544, %v541, %v543
        %549 = vst [vmem:[#allocation3 + $0x60] sm:$0xff] %v545
        %550 = vst [vmem:[#allocation3 + $0x68] sm:$0xff] %v546
        %v551 = vld [vmem:[#allocation2] sm:$0xff]
        %v552 = vld [vmem:[#allocation2 + $0x8] sm:$0xff]
        %v553 = vld [vmem:[#allocation2 + $0x10] sm:$0xff]
        %557 = vrot.lane.b32.xlu0 %v551, 95
        %v558 = vpop.permute.xlu0 %557
        %559 = vrot.lane.b32.xlu0 %v552, 95
        %v560 = vpop.permute.xlu0 %559
        %561 = vrot.lane.b32.xlu0 %v553, 95
        %v562 = vpop.permute.xlu0 %561
        %vm563 = vcmask 777216
        %v564 = vsel %vm563, %v558, %v560
        %v565 = vsel %vm563, %v560, %v562
        %568 = vst [vmem:[#allocation3 + $0x70] sm:$0xff] %v564
        %569 = vst [vmem:[#allocation3 + $0x78] sm:$0xff] %v565
        %v570 = vld [vmem:[#allocation2] sm:$0xff]
        %v571 = vld [vmem:[#allocation2 + $0x8] sm:$0xff]
        %v572 = vld [vmem:[#allocation2 + $0x10] sm:$0xff]
        %v573 = vld [vmem:[%s370] sm:$0x3]
        %v575 = vlaneseq
        %v576 = vshrl.u32 %v575, 7
        %v577 = vsub.s32 0, %v576
        %v578 = vrot.slane %v573, %v577
        %v579 = vlaneseq
        %v580 = vshrl.u32 %v579, 7
        %v581 = vsub.s32 1, %v580
        %v582 = vrot.slane %v573, %v581
        %583 = vrot.lane.b32.xlu0 %v578, 34
        %v584 = vpop.permute.xlu0 %583
        %585 = vrot.lane.b32.xlu0 %v582, 34
        %v586 = vpop.permute.xlu0 %585
        %vm587 = vcmask 277504
        %v588 = vsel %vm587, %v584, %v586
        %v592 = vmul.f32 %v570, %v584
        %v593 = vmul.f32 %v571, %v588
        %v594 = vmul.f32 %v572, %v586
        %598 = vrot.lane.b32.xlu0 %v592, 94
        %v599 = vpop.permute.xlu0 %598
        %600 = vrot.lane.b32.xlu0 %v593, 94
        %v601 = vpop.permute.xlu0 %600
        %602 = vrot.lane.b32.xlu0 %v594, 94
        %v603 = vpop.permute.xlu0 %602
        %vm604 = vcmask 769024
        %v605 = vsel %vm604, %v599, %v601
        %v606 = vsel %vm604, %v601, %v603
        %609 = vst [vmem:[#allocation3 + $0x80] sm:$0xff] %v605
        %610 = vst [vmem:[#allocation3 + $0x88] sm:$0xff] %v606
        %v611 = vld [vmem:[%s2] sm:$0xf]
        %v612 = vld [vmem:[#allocation3] sm:$0xff]
        %v613 = vld [vmem:[#allocation3 + $0x8] sm:$0xff]
        %v614 = vld [vmem:[#allocation3 + $0x10] sm:$0xff]
        %v615 = vld [vmem:[#allocation3 + $0x18] sm:$0xff]
        %v616 = vld [vmem:[#allocation3 + $0x20] sm:$0xff]
        %v617 = vld [vmem:[#allocation3 + $0x28] sm:$0xff]
        %v618 = vld [vmem:[#allocation3 + $0x30] sm:$0xff]
        %v619 = vld [vmem:[#allocation3 + $0x38] sm:$0xff]
        %v620 = vld [vmem:[#allocation3 + $0x40] sm:$0xff]
        %v621 = vld [vmem:[#allocation3 + $0x48] sm:$0xff]
        %v622 = vld [vmem:[#allocation3 + $0x50] sm:$0xff]
        %v623 = vld [vmem:[#allocation3 + $0x58] sm:$0xff]
        %v624 = vld [vmem:[#allocation3 + $0x60] sm:$0xff]
        %v625 = vld [vmem:[#allocation3 + $0x68] sm:$0xff]
        %v626 = vld [vmem:[#allocation3 + $0x70] sm:$0xff]
        %v627 = vld [vmem:[#allocation3 + $0x78] sm:$0xff]
        %v628 = vld [vmem:[#allocation3 + $0x80] sm:$0xff]
        %v629 = vld [vmem:[#allocation3 + $0x88] sm:$0xff]
        %v630 = vpack.c.bf16 %v614, %v612
        %v631 = vpack.c.bf16 %v615, %v613
        %v632 = vpack.c.bf16 %v618, %v616
        %v633 = vpack.c.bf16 %v619, %v617
        %v634 = vpack.c.bf16 %v622, %v620
        %v635 = vpack.c.bf16 %v623, %v621
        %v636 = vpack.c.bf16 %v626, %v624
        %v637 = vpack.c.bf16 %v627, %v625
        %v638 = vpack.c.bf16 %v628, %v628
        %v639 = vpack.c.bf16 %v629, %v629
        %vm640 = vcmask 588800
        %v642 = vsel %vm640, %v611, 0
        %vm644 = vcmask 1043456
        %v646 = vsel %vm644, %v638, 0
        %v649 = vsel %vm644, %v639, 0
        %651 = vmatprep.subr.bf16.mxu0 0
        %652 = vmatpush1.bf16.msra.mxu0 0
        %653 = vmatprep.subr.bf16.mxu0 0
        %654 = vmatpush1.bf16.msra.mxu0 0
        %655 = vmatprep.subr.bf16.mxu0 0
        %656 = vmatpush1.bf16.msra.mxu0 0
        %657 = vmatprep.subr.bf16.mxu0 %v649
        %658 = vmatpush1.bf16.msra.mxu0 %v646
        %659 = vmatprep.subr.bf16.mxu0 %v637
        %660 = vmatpush1.bf16.msra.mxu0 %v636
        %661 = vmatprep.subr.bf16.mxu0 %v635
        %662 = vmatpush1.bf16.msra.mxu0 %v634
        %663 = vmatprep.subr.bf16.mxu0 %v633
        %664 = vmatpush1.bf16.msra.mxu0 %v632
        %665 = vmatprep.subr.bf16.mxu0 %v631
        %666 = vmatpush1.bf16.msra.mxu0 %v630
        %667 = vmatprep.subr.bf16.mxu0 0
        %668 = vmatpush2.bf16.msra.mxu0 0
        %669 = vmatprep.subr.bf16.mxu0 0
        %670 = vmatpush2.bf16.msra.mxu0 0
        %671 = vmatprep.subr.bf16.mxu0 0
        %672 = vmatpush2.bf16.msra.mxu0 0
        %673 = vmatprep.subr.bf16.mxu0 0
        %674 = vmatpush2.bf16.msra.mxu0 0
        %675 = vmatprep.subr.bf16.mxu0 0
        %676 = vmatpush2.bf16.msra.mxu0 0
        %677 = vmatprep.subr.bf16.mxu0 0
        %678 = vmatpush2.bf16.msra.mxu0 0
        %679 = vmatprep.subr.bf16.mxu0 0
        %680 = vmatpush2.bf16.msra.mxu0 0
        %681 = vmatprep.subr.bf16.mxu0 0
        %682 = vmatpush2.bf16.msra.mxu0 0
        %683 = vmatprep.mubr.bf16.mxu0 0
        %684 = vmatmul.mubr.bf16.gmra.mxu0 %v642
        %v685 = vpop.f32.mrf.mxu0
        %v686 = vadd.f32 0.0, %v685
        %v687 = vpop.f32.mrf.mxu0
        %v688 = vadd.f32 0.0, %v687
        %v689 = vpop.f32.mrf.mxu0
        %v690 = vpop.f32.mrf.mxu0
        %691 = vdwg.mxu0
        %v692 = vadd.f32 %v686, %v688
        %693 = vadd.xlane.f32.xlu0 %v692
        %v694 = vpop.xlane.xlu0 %693
        %v695 = vrot.slane %v694, 4
        %v696 = vadd.f32 %v694, %v695
        %v697 = vrot.slane %v696, 2
        %v698 = vadd.f32 %v696, %v697
        %v699 = vrot.slane %v698, 1
        %v700 = vadd.f32 %v698, %v699
        %s701 = vtos %v700
        %v702 = vmul.f32 %v686, %v686
        %v703 = vmul.f32 %v688, %v688
        %v704 = vadd.f32 %v702, %v703
        %705 = vadd.xlane.f32.xlu0 %v704
        %v706 = vpop.xlane.xlu0 %705
        %v707 = vrot.slane %v706, 4
        %v708 = vadd.f32 %v706, %v707
        %v709 = vrot.slane %v708, 2
        %v710 = vadd.f32 %v708, %v709
        %v711 = vrot.slane %v710, 1
        %v712 = vadd.f32 %v710, %v711
        %s713 = vtos %v712
        %v714 = vrcp.pop 2048.0
        %s715 = vtos %v714
        %s716 = smul.f32 %s701, %s715
        %v717 = vrcp.pop 2048.0
        %s718 = vtos %v717
        %s719 = smul.f32 %s713, %s718
        %s720 = smul.f32 %s716, %s716
        %s721 = ssub.f32 %s719, %s720
        %s722 = smax.f32 %s721, 0.0
        %s723 = sadd.f32 %s722, 1e-05
        %v724 = vstv %s723
        %v725 = vrsqrt.pop %v724
        %s726 = vtos %v725
        %v727 = vstv %s716
        %v728 = vsub.f32 %v686, %v727
        %v729 = vsub.f32 %v688, %v727
        %v730 = vstv %s726
        %v731 = vmul.f32 %v728, %v730
        %v732 = vmul.f32 %v729, %v730
        %v733 = vld [vmem:[%s3] sm:$0xff]
        %735 = vset.pattern.permute.xlu0 0
        %736 = vperm.xlu0 %735, %v733
        %v737 = vpop.permute.xlu0 %736
        %v739 = vmul.f32 %v731, %v737
        %v740 = vmul.f32 %v732, %v737
        %v741 = vld [vmem:[%s4] sm:$0xff]
        %743 = vset.pattern.permute.xlu0 0
        %744 = vperm.xlu0 %743, %v741
        %v745 = vpop.permute.xlu0 %744
        %v747 = vadd.f32 %v739, %v745
        %v748 = vadd.f32 %v740, %v745
        %v749 = vmul.f32 %v747, 0.5
        %v750 = vmul.f32 %v748, 0.5
        %v751 = vmul.f32 %v747, 0.70710677
        %v752 = vmul.f32 %v748, 0.70710677
        %v753 = verf.f32.pop %v751
        %v754 = verf.f32.pop %v752
        %v755 = vadd.f32 %v753, 1.0
        %v756 = vadd.f32 %v754, 1.0
        %v757 = vmul.f32 %v749, %v755
        %v758 = vmul.f32 %v750, %v756
        %759 = vst.msk [vmem:[#allocation4] sm:$0xff] %vm306, 0.0
        %760 = vst.msk [vmem:[#allocation4 + $0x10] sm:$0xff] %vm308, 0.0
        %763 = vrot.lane.b32.xlu0 %v757, 17
        %v764 = vpop.permute.xlu0 %763
        %765 = vrot.lane.b32.xlu0 %v758, 17
        %v766 = vpop.permute.xlu0 %765
        %v767 = vsel %vm306, %v764, %v766
        %vm771 = vcmask 1047688
        %772 = vst.msk [vmem:[#allocation4] sm:$0xff] %vm771, %v764
        %773 = vst [vmem:[#allocation4 + $0x8] sm:$0xff] %v767
        %774 = vst.msk [vmem:[#allocation4 + $0x10] sm:$0xff] %vm306, %v766
        %v775 = vld [vmem:[#allocation4] sm:$0xff]
        %v776 = vld [vmem:[#allocation4 + $0x8] sm:$0xff]
        %v777 = vld [vmem:[%s1] sm:$0x3]
        %v779 = vlaneseq
        %v780 = vshrl.u32 %v779, 7
        %v781 = vsub.s32 0, %v780
        %v782 = vrot.slane %v777, %v781
        %v783 = vlaneseq
        %v784 = vshrl.u32 %v783, 7
        %v785 = vsub.s32 1, %v784
        %v786 = vrot.slane %v777, %v785
        %v789 = vmul.f32 %v775, %v782
        %v790 = vmul.f32 %v776, %v786
        %791 = vst [vmem:[#allocation5] sm:$0xff] %v789
        %792 = vst [vmem:[#allocation5 + $0x8] sm:$0xff] %v790
        %v793 = vld [vmem:[#allocation4] sm:$0xff]
        %v794 = vld [vmem:[#allocation4 + $0x8] sm:$0xff]
        %v795 = vld [vmem:[#allocation4 + $0x10] sm:$0xff]
        %799 = vrot.lane.b32.xlu0 %v793, 127
        %v800 = vpop.permute.xlu0 %799
        %801 = vrot.lane.b32.xlu0 %v794, 127
        %v802 = vpop.permute.xlu0 %801
        %803 = vrot.lane.b32.xlu0 %v795, 127
        %v804 = vpop.permute.xlu0 %803
        %v805 = vsel %vm360, %v800, %v802
        %v806 = vsel %vm360, %v802, %v804
        %809 = vst [vmem:[#allocation5 + $0x10] sm:$0xff] %v805
        %810 = vst [vmem:[#allocation5 + $0x18] sm:$0xff] %v806
        %v811 = vld [vmem:[#allocation4] sm:$0xff]
        %v812 = vld [vmem:[#allocation4 + $0x8] sm:$0xff]
        %v813 = vld [vmem:[#allocation4 + $0x10] sm:$0xff]
        %v814 = vld [vmem:[%s370] sm:$0x3]
        %v816 = vlaneseq
        %v817 = vshrl.u32 %v816, 7
        %v818 = vsub.s32 0, %v817
        %v819 = vrot.slane %v814, %v818
        %v820 = vlaneseq
        %v821 = vshrl.u32 %v820, 7
        %v822 = vsub.s32 1, %v821
        %v823 = vrot.slane %v814, %v822
        %824 = vrot.lane.b32.xlu0 %v819, 2
        %v825 = vpop.permute.xlu0 %824
        %826 = vrot.lane.b32.xlu0 %v823, 2
        %v827 = vpop.permute.xlu0 %826
        %v828 = vsel %vm385, %v825, %v827
        %v832 = vmul.f32 %v811, %v825
        %v833 = vmul.f32 %v812, %v828
        %v834 = vmul.f32 %v813, %v827
        %838 = vrot.lane.b32.xlu0 %v832, 126
        %v839 = vpop.permute.xlu0 %838
        %840 = vrot.lane.b32.xlu0 %v833, 126
        %v841 = vpop.permute.xlu0 %840
        %842 = vrot.lane.b32.xlu0 %v834, 126
        %v843 = vpop.permute.xlu0 %842
        %v844 = vsel %vm402, %v839, %v841
        %v845 = vsel %vm402, %v841, %v843
        %848 = vst [vmem:[#allocation5 + $0x20] sm:$0xff] %v844
        %849 = vst [vmem:[#allocation5 + $0x28] sm:$0xff] %v845
        %v850 = vld [vmem:[#allocation4] sm:$0xff]
        %v851 = vld [vmem:[#allocation4 + $0x8] sm:$0xff]
        %v852 = vld [vmem:[#allocation4 + $0x10] sm:$0xff]
        %v853 = vld [vmem:[%s1] sm:$0x3]
        %v855 = vlaneseq
        %v856 = vshrl.u32 %v855, 7
        %v857 = vsub.s32 0, %v856
        %v858 = vrot.slane %v853, %v857
        %v859 = vlaneseq
        %v860 = vshrl.u32 %v859, 7
        %v861 = vsub.s32 1, %v860
        %v862 = vrot.slane %v853, %v861
        %863 = vrot.lane.b32.xlu0 %v858, 16
        %v864 = vpop.permute.xlu0 %863
        %865 = vrot.lane.b32.xlu0 %v862, 16
        %v866 = vpop.permute.xlu0 %865
        %v867 = vsel %vm426, %v864, %v866
        %v871 = vmul.f32 %v850, %v864
        %v872 = vmul.f32 %v851, %v867
        %v873 = vmul.f32 %v852, %v866
        %877 = vrot.lane.b32.xlu0 %v871, 112
        %v878 = vpop.permute.xlu0 %877
        %879 = vrot.lane.b32.xlu0 %v872, 112
        %v880 = vpop.permute.xlu0 %879
        %881 = vrot.lane.b32.xlu0 %v873, 112
        %v882 = vpop.permute.xlu0 %881
        %v883 = vsel %vm443, %v878, %v880
        %v884 = vsel %vm443, %v880, %v882
        %887 = vst [vmem:[#allocation5 + $0x30] sm:$0xff] %v883
        %888 = vst [vmem:[#allocation5 + $0x38] sm:$0xff] %v884
        %v889 = vld [vmem:[#allocation4] sm:$0xff]
        %v890 = vld [vmem:[#allocation4 + $0x8] sm:$0xff]
        %v891 = vld [vmem:[#allocation4 + $0x10] sm:$0xff]
        %895 = vrot.lane.b32.xlu0 %v889, 111
        %v896 = vpop.permute.xlu0 %895
        %897 = vrot.lane.b32.xlu0 %v890, 111
        %v898 = vpop.permute.xlu0 %897
        %899 = vrot.lane.b32.xlu0 %v891, 111
        %v900 = vpop.permute.xlu0 %899
        %v901 = vsel %vm462, %v896, %v898
        %v902 = vsel %vm462, %v898, %v900
        %905 = vst [vmem:[#allocation5 + $0x40] sm:$0xff] %v901
        %906 = vst [vmem:[#allocation5 + $0x48] sm:$0xff] %v902
        %v907 = vld [vmem:[#allocation4] sm:$0xff]
        %v908 = vld [vmem:[#allocation4 + $0x8] sm:$0xff]
        %v909 = vld [vmem:[#allocation4 + $0x10] sm:$0xff]
        %v910 = vld [vmem:[%s370] sm:$0x3]
        %v912 = vlaneseq
        %v913 = vshrl.u32 %v912, 7
        %v914 = vsub.s32 0, %v913
        %v915 = vrot.slane %v910, %v914
        %v916 = vlaneseq
        %v917 = vshrl.u32 %v916, 7
        %v918 = vsub.s32 1, %v917
        %v919 = vrot.slane %v910, %v918
        %920 = vrot.lane.b32.xlu0 %v915, 18
        %v921 = vpop.permute.xlu0 %920
        %922 = vrot.lane.b32.xlu0 %v919, 18
        %v923 = vpop.permute.xlu0 %922
        %v924 = vsel %vm486, %v921, %v923
        %v928 = vmul.f32 %v907, %v921
        %v929 = vmul.f32 %v908, %v924
        %v930 = vmul.f32 %v909, %v923
        %934 = vrot.lane.b32.xlu0 %v928, 110
        %v935 = vpop.permute.xlu0 %934
        %936 = vrot.lane.b32.xlu0 %v929, 110
        %v937 = vpop.permute.xlu0 %936
        %938 = vrot.lane.b32.xlu0 %v930, 110
        %v939 = vpop.permute.xlu0 %938
        %v940 = vsel %vm503, %v935, %v937
        %v941 = vsel %vm503, %v937, %v939
        %944 = vst [vmem:[#allocation5 + $0x50] sm:$0xff] %v940
        %945 = vst [vmem:[#allocation5 + $0x58] sm:$0xff] %v941
        %v946 = vld [vmem:[#allocation4] sm:$0xff]
        %v947 = vld [vmem:[#allocation4 + $0x8] sm:$0xff]
        %v948 = vld [vmem:[#allocation4 + $0x10] sm:$0xff]
        %v949 = vld [vmem:[%s1] sm:$0x3]
        %v951 = vlaneseq
        %v952 = vshrl.u32 %v951, 7
        %v953 = vsub.s32 0, %v952
        %v954 = vrot.slane %v949, %v953
        %v955 = vlaneseq
        %v956 = vshrl.u32 %v955, 7
        %v957 = vsub.s32 1, %v956
        %v958 = vrot.slane %v949, %v957
        %959 = vrot.lane.b32.xlu0 %v954, 32
        %v960 = vpop.permute.xlu0 %959
        %961 = vrot.lane.b32.xlu0 %v958, 32
        %v962 = vpop.permute.xlu0 %961
        %v963 = vsel %vm527, %v960, %v962
        %v967 = vmul.f32 %v946, %v960
        %v968 = vmul.f32 %v947, %v963
        %v969 = vmul.f32 %v948, %v962
        %973 = vrot.lane.b32.xlu0 %v967, 96
        %v974 = vpop.permute.xlu0 %973
        %975 = vrot.lane.b32.xlu0 %v968, 96
        %v976 = vpop.permute.xlu0 %975
        %977 = vrot.lane.b32.xlu0 %v969, 96
        %v978 = vpop.permute.xlu0 %977
        %v979 = vsel %vm544, %v974, %v976
        %v980 = vsel %vm544, %v976, %v978
        %983 = vst [vmem:[#allocation5 + $0x60] sm:$0xff] %v979
        %984 = vst [vmem:[#allocation5 + $0x68] sm:$0xff] %v980
        %v985 = vld [vmem:[#allocation4] sm:$0xff]
        %v986 = vld [vmem:[#allocation4 + $0x8] sm:$0xff]
        %v987 = vld [vmem:[#allocation4 + $0x10] sm:$0xff]
        %991 = vrot.lane.b32.xlu0 %v985, 95
        %v992 = vpop.permute.xlu0 %991
        %993 = vrot.lane.b32.xlu0 %v986, 95
        %v994 = vpop.permute.xlu0 %993
        %995 = vrot.lane.b32.xlu0 %v987, 95
        %v996 = vpop.permute.xlu0 %995
        %v997 = vsel %vm563, %v992, %v994
        %v998 = vsel %vm563, %v994, %v996
        %1001 = vst [vmem:[#allocation5 + $0x70] sm:$0xff] %v997
        %1002 = vst [vmem:[#allocation5 + $0x78] sm:$0xff] %v998
        %v1003 = vld [vmem:[#allocation4] sm:$0xff]
        %v1004 = vld [vmem:[#allocation4 + $0x8] sm:$0xff]
        %v1005 = vld [vmem:[#allocation4 + $0x10] sm:$0xff]
        %v1006 = vld [vmem:[%s370] sm:$0x3]
        %v1008 = vlaneseq
        %v1009 = vshrl.u32 %v1008, 7
        %v1010 = vsub.s32 0, %v1009
        %v1011 = vrot.slane %v1006, %v1010
        %v1012 = vlaneseq
        %v1013 = vshrl.u32 %v1012, 7
        %v1014 = vsub.s32 1, %v1013
        %v1015 = vrot.slane %v1006, %v1014
        %1016 = vrot.lane.b32.xlu0 %v1011, 34
        %v1017 = vpop.permute.xlu0 %1016
        %1018 = vrot.lane.b32.xlu0 %v1015, 34
        %v1019 = vpop.permute.xlu0 %1018
        %v1020 = vsel %vm587, %v1017, %v1019
        %v1024 = vmul.f32 %v1003, %v1017
        %v1025 = vmul.f32 %v1004, %v1020
        %v1026 = vmul.f32 %v1005, %v1019
        %1030 = vrot.lane.b32.xlu0 %v1024, 94
        %v1031 = vpop.permute.xlu0 %1030
        %1032 = vrot.lane.b32.xlu0 %v1025, 94
        %v1033 = vpop.permute.xlu0 %1032
        %1034 = vrot.lane.b32.xlu0 %v1026, 94
        %v1035 = vpop.permute.xlu0 %1034
        %v1036 = vsel %vm604, %v1031, %v1033
        %v1037 = vsel %vm604, %v1033, %v1035
        %1040 = vst [vmem:[#allocation5 + $0x80] sm:$0xff] %v1036
        %1041 = vst [vmem:[#allocation5 + $0x88] sm:$0xff] %v1037
        %v1042 = vld [vmem:[%s5] sm:$0xf]
        %v1043 = vld [vmem:[#allocation5] sm:$0xff]
        %v1044 = vld [vmem:[#allocation5 + $0x8] sm:$0xff]
        %v1045 = vld [vmem:[#allocation5 + $0x10] sm:$0xff]
        %v1046 = vld [vmem:[#allocation5 + $0x18] sm:$0xff]
        %v1047 = vld [vmem:[#allocation5 + $0x20] sm:$0xff]
        %v1048 = vld [vmem:[#allocation5 + $0x28] sm:$0xff]
        %v1049 = vld [vmem:[#allocation5 + $0x30] sm:$0xff]
        %v1050 = vld [vmem:[#allocation5 + $0x38] sm:$0xff]
        %v1051 = vld [vmem:[#allocation5 + $0x40] sm:$0xff]
        %v1052 = vld [vmem:[#allocation5 + $0x48] sm:$0xff]
        %v1053 = vld [vmem:[#allocation5 + $0x50] sm:$0xff]
        %v1054 = vld [vmem:[#allocation5 + $0x58] sm:$0xff]
        %v1055 = vld [vmem:[#allocation5 + $0x60] sm:$0xff]
        %v1056 = vld [vmem:[#allocation5 + $0x68] sm:$0xff]
        %v1057 = vld [vmem:[#allocation5 + $0x70] sm:$0xff]
        %v1058 = vld [vmem:[#allocation5 + $0x78] sm:$0xff]
        %v1059 = vld [vmem:[#allocation5 + $0x80] sm:$0xff]
        %v1060 = vld [vmem:[#allocation5 + $0x88] sm:$0xff]
        %v1061 = vpack.c.bf16 %v1045, %v1043
        %v1062 = vpack.c.bf16 %v1046, %v1044
        %v1063 = vpack.c.bf16 %v1049, %v1047
        %v1064 = vpack.c.bf16 %v1050, %v1048
        %v1065 = vpack.c.bf16 %v1053, %v1051
        %v1066 = vpack.c.bf16 %v1054, %v1052
        %v1067 = vpack.c.bf16 %v1057, %v1055
        %v1068 = vpack.c.bf16 %v1058, %v1056
        %v1069 = vpack.c.bf16 %v1059, %v1059
        %v1070 = vpack.c.bf16 %v1060, %v1060
        %v1072 = vsel %vm640, %v1042, 0
        %v1075 = vsel %vm644, %v1069, 0
        %v1078 = vsel %vm644, %v1070, 0
        %1080 = vmatprep.subr.bf16.mxu0 0
        %1081 = vmatpush1.bf16.msra.mxu0 0
        %1082 = vmatprep.subr.bf16.mxu0 0
        %1083 = vmatpush1.bf16.msra.mxu0 0
        %1084 = vmatprep.subr.bf16.mxu0 0
        %1085 = vmatpush1.bf16.msra.mxu0 0
        %1086 = vmatprep.subr.bf16.mxu0 %v1078
        %1087 = vmatpush1.bf16.msra.mxu0 %v1075
        %1088 = vmatprep.subr.bf16.mxu0 %v1068
        %1089 = vmatpush1.bf16.msra.mxu0 %v1067
        %1090 = vmatprep.subr.bf16.mxu0 %v1066
        %1091 = vmatpush1.bf16.msra.mxu0 %v1065
        %1092 = vmatprep.subr.bf16.mxu0 %v1064
        %1093 = vmatpush1.bf16.msra.mxu0 %v1063
        %1094 = vmatprep.subr.bf16.mxu0 %v1062
        %1095 = vmatpush1.bf16.msra.mxu0 %v1061
        %1096 = vmatprep.subr.bf16.mxu0 0
        %1097 = vmatpush2.bf16.msra.mxu0 0
        %1098 = vmatprep.subr.bf16.mxu0 0
        %1099 = vmatpush2.bf16.msra.mxu0 0
        %1100 = vmatprep.subr.bf16.mxu0 0
        %1101 = vmatpush2.bf16.msra.mxu0 0
        %1102 = vmatprep.subr.bf16.mxu0 0
        %1103 = vmatpush2.bf16.msra.mxu0 0
        %1104 = vmatprep.subr.bf16.mxu0 0
        %1105 = vmatpush2.bf16.msra.mxu0 0
        %1106 = vmatprep.subr.bf16.mxu0 0
        %1107 = vmatpush2.bf16.msra.mxu0 0
        %1108 = vmatprep.subr.bf16.mxu0 0
        %1109 = vmatpush2.bf16.msra.mxu0 0
        %1110 = vmatprep.subr.bf16.mxu0 0
        %1111 = vmatpush2.bf16.msra.mxu0 0
        %1112 = vmatprep.mubr.bf16.mxu0 0
        %1113 = vmatmul.mubr.bf16.gmra.mxu0 %v1072
        %v1114 = vpop.f32.mrf.mxu0
        %v1115 = vadd.f32 0.0, %v1114
        %v1116 = vpop.f32.mrf.mxu0
        %v1117 = vadd.f32 0.0, %v1116
        %v1118 = vpop.f32.mrf.mxu0
        %v1119 = vpop.f32.mrf.mxu0
        %1120 = vdwg.mxu0
        %v1121 = vadd.f32 %v1115, %v1117
        %1122 = vadd.xlane.f32.xlu0 %v1121
        %v1123 = vpop.xlane.xlu0 %1122
        %v1124 = vrot.slane %v1123, 4
        %v1125 = vadd.f32 %v1123, %v1124
        %v1126 = vrot.slane %v1125, 2
        %v1127 = vadd.f32 %v1125, %v1126
        %v1128 = vrot.slane %v1127, 1
        %v1129 = vadd.f32 %v1127, %v1128
        %s1130 = vtos %v1129
        %v1131 = vmul.f32 %v1115, %v1115
        %v1132 = vmul.f32 %v1117, %v1117
        %v1133 = vadd.f32 %v1131, %v1132
        %1134 = vadd.xlane.f32.xlu0 %v1133
        %v1135 = vpop.xlane.xlu0 %1134
        %v1136 = vrot.slane %v1135, 4
        %v1137 = vadd.f32 %v1135, %v1136
        %v1138 = vrot.slane %v1137, 2
        %v1139 = vadd.f32 %v1137, %v1138
        %v1140 = vrot.slane %v1139, 1
        %v1141 = vadd.f32 %v1139, %v1140
        %s1142 = vtos %v1141
        %v1143 = vrcp.pop 2048.0
        %s1144 = vtos %v1143
        %s1145 = smul.f32 %s1130, %s1144
        %v1146 = vrcp.pop 2048.0
        %s1147 = vtos %v1146
        %s1148 = smul.f32 %s1142, %s1147
        %s1149 = smul.f32 %s1145, %s1145
        %s1150 = ssub.f32 %s1148, %s1149
        %s1151 = smax.f32 %s1150, 0.0
        %s1152 = sadd.f32 %s1151, 1e-05
        %v1153 = vstv %s1152
        %v1154 = vrsqrt.pop %v1153
        %s1155 = vtos %v1154
        %v1156 = vstv %s1145
        %v1157 = vsub.f32 %v1115, %v1156
        %v1158 = vsub.f32 %v1117, %v1156
        %v1159 = vstv %s1155
        %v1160 = vmul.f32 %v1157, %v1159
        %v1161 = vmul.f32 %v1158, %v1159
        %v1162 = vld [vmem:[%s6] sm:$0xff]
        %1164 = vset.pattern.permute.xlu0 0
        %1165 = vperm.xlu0 %1164, %v1162
        %v1166 = vpop.permute.xlu0 %1165
        %v1168 = vmul.f32 %v1160, %v1166
        %v1169 = vmul.f32 %v1161, %v1166
        %v1170 = vld [vmem:[%s7] sm:$0xff]
        %1172 = vset.pattern.permute.xlu0 0
        %1173 = vperm.xlu0 %1172, %v1170
        %v1174 = vpop.permute.xlu0 %1173
        %v1176 = vadd.f32 %v1168, %v1174
        %v1177 = vadd.f32 %v1169, %v1174
        %1178 = vst [vmem:[%s298] sm:$0xff] %v1176
        %1179 = vst [vmem:[%s298 + $0x8] sm:$0xff] %v1177
        %s1180 = sand.u32 %s203, 1
        %s1181 = scalar_lea.sflag [#allocation7], %s1180
        %s1182 = sand.u32 %s203, 1
        %s1183 = smul.addr %s1182, 16
        %s1184 = scalar_lea.vmem [#allocation6], %s1183
        // Predicated region
        $region53: #{tpu_custom_call.1} parent=51 // pred_check
          %p1185 = pneg %p213
        $region54: #{tpu_custom_call.1} parent=51 // pred_check_branch
          %1187 = sbr.rel (%p1185) target = $region56
        $region55: #{tpu_custom_call.1} parent=51 // pred_region
          %s1189 = ssub.s32 256, 256
          %1190 = vsyncadd %s1181, %s1189
          %s1191 = smul.addr %s22, 2
          %s1192 = smul.addr %s1191, 128
          %s1193 = scalar_lea.hbm %s8, %s1192
          %s1195 = sshll.u32 %s1184, 4
          %s1196 = int_to_ptr.vmem [resolvable:$true] %s1195
          %1198 = dma.vmem_to_hbm [thread:$0]  %s1196, 256, %s1193, %s1181
        $region56: #{tpu_custom_call.1} parent=51 // pred_fallthru
          _
      $region52: #{tpu_custom_call.1} parent=5 // pred_fallthru
        _
      %p1199 = scmp.le.s32.totalorder 2, %s17
      // Predicated region
      $region57: #{tpu_custom_call.1} parent=5 // pred_check
        %p1200 = pneg %p1199
      $region58: #{tpu_custom_call.1} parent=5 // pred_check_branch
        %1202 = sbr.rel (%p1200) target = $region60
      $region59: #{tpu_custom_call.1} parent=5 // pred_region
        %s1203 = ssub.s32 %s17, 2
        // Predicated region
        $region61: #{tpu_custom_call.1} parent=59 // pred_check
          %p1204 = pneg %p219
        $region62: #{tpu_custom_call.1} parent=59 // pred_check_branch
          %1206 = sbr.rel (%p1204) target = $region64
        $region63: #{tpu_custom_call.1} parent=59 // pred_region
          %s1207 = sand.u32 %s204, 1
          %s1208 = scalar_lea.sflag [#allocation7], %s1207
          %s1209 = sand.u32 %s204, 1
          %s1210 = smul.addr %s1209, 16
          %s1211 = scalar_lea.vmem [#allocation6], %s1210
          %1212 = dma.done %s1208, 256
        $region64: #{tpu_custom_call.1} parent=59 // pred_fallthru
          _
      $region60: #{tpu_custom_call.1} parent=5 // pred_fallthru
        _
    $region6: #{tpu_custom_call.1} parent=1 // loop_footer
      %s21 = sadd.s32 1, %s17
    $region7: #{tpu_custom_call.1} parent=1 // loop_footer_branch
      %16 = sbr.rel target = $region3
    $region8: #{tpu_custom_call.1} parent=1 // loop_exit
      _
    %1213 = vsyncpa [#allocation7], 1
    %s1214 = scalar_lea.sflag [#allocation7], 1
    %1215 = vsyncpa %s1214, 1

</llo_original>
